<compile_context>
chip_gen: v7x
topology: tpu7x:2x2x1
jax: 0.10.0
libtpu: 0.0.40
codegen_flags: <defaults>
</compile_context>

<pallas_src>
import math

import jax
import jax.numpy as jnp
from jax.experimental import pallas as pl
from jax.experimental.pallas import tpu as pltpu

# ---------------------------------------------------------------------------
# Model config (small, BERT-like)
# ---------------------------------------------------------------------------
VOCAB = 50
MAX_POS = 32
TYPE_VOCAB = 2
HIDDEN = 32
NUM_LAYERS = 2
NUM_HEADS = 2
HEAD_DIM = HIDDEN // NUM_HEADS
INTERMEDIATE = 64
NUM_CLASSES = 3
LN_EPS = 1e-12
BATCH_SHARDS = 2          # parallel grid axis (uses v7x's second TensorCore)


# ---------------------------------------------------------------------------
# In-kernel helpers (f32 math)
# ---------------------------------------------------------------------------
def _layer_norm(x, gamma, beta):
    mu = jnp.mean(x, axis=-1, keepdims=True)
    var = jnp.mean((x - mu) ** 2, axis=-1, keepdims=True)
    return (x - mu) * jax.lax.rsqrt(var + LN_EPS) * gamma + beta


def _gelu(x):
    # TODO(synk): PyTorch BERT uses erf-GELU; tanh approximation differs ~1e-3.
    c = math.sqrt(2.0 / math.pi)
    return 0.5 * x * (1.0 + jnp.tanh(c * (x + 0.044715 * x * x * x)))


# ---------------------------------------------------------------------------
# Parameter construction (deterministic synthetic weights, stacked per layer)
# Matmul weights are stored in bf16 (halves the per-layer weight stream);
# biases / LayerNorm params stay f32.
# ---------------------------------------------------------------------------
def init_params(key):
    std = 0.02
    keys = iter(jax.random.split(key, 32))

    def nrm(shape, dtype=jnp.bfloat16):
        return (std * jax.random.normal(next(keys), shape)).astype(dtype)

    L = NUM_LAYERS
    return {
        "word_emb": nrm((VOCAB, HIDDEN), jnp.float32),
        "pos_emb": nrm((MAX_POS, HIDDEN), jnp.float32),
        "type_emb": nrm((TYPE_VOCAB, HIDDEN), jnp.float32),
        "emb_ln_g": jnp.ones((1, HIDDEN), jnp.float32),
        "emb_ln_b": jnp.zeros((1, HIDDEN), jnp.float32),
        # fused QKV weight / bias
        "wqkv": nrm((L, HIDDEN, 3 * HIDDEN)),
        "bqkv": jnp.zeros((L, 1, 3 * HIDDEN), jnp.float32),
        "wo": nrm((L, HIDDEN, HIDDEN)),
        "bo": jnp.zeros((L, 1, HIDDEN), jnp.float32),
        "ln1_g": jnp.ones((L, 1, HIDDEN), jnp.float32),
        "ln1_b": jnp.zeros((L, 1, HIDDEN), jnp.float32),
        "w1": nrm((L, HIDDEN, INTERMEDIATE)),
        "b1": jnp.zeros((L, 1, INTERMEDIATE), jnp.float32),
        "w2": nrm((L, INTERMEDIATE, HIDDEN)),
        "b2": jnp.zeros((L, 1, HIDDEN), jnp.float32),
        "ln2_g": jnp.ones((L, 1, HIDDEN), jnp.float32),
        "ln2_b": jnp.zeros((L, 1, HIDDEN), jnp.float32),
        "pool_w": nrm((HIDDEN, HIDDEN)),
        "pool_b": jnp.zeros((1, HIDDEN), jnp.float32),
        "fc_w": nrm((HIDDEN, NUM_CLASSES)),
        "fc_b": jnp.zeros((1, NUM_CLASSES), jnp.float32),
    }


# ---------------------------------------------------------------------------
# BlockSpec helpers (index maps take both grid indices: (batch_shard, layer))
# ---------------------------------------------------------------------------
def _const_spec(shape):
    nd = len(shape)
    return pl.BlockSpec(tuple(shape), lambda b, l, nd=nd: (0,) * nd)


def _layer_spec(shape):
    nd = len(shape)
    return pl.BlockSpec((None,) + tuple(shape[1:]),
                        lambda b, l, nd=nd: (l,) + (0,) * (nd - 1))


def _shard_spec(shape):
    nd = len(shape)
    return pl.BlockSpec((None,) + tuple(shape[1:]),
                        lambda b, l, nd=nd: (b,) + (0,) * (nd - 1))


# ---------------------------------------------------------------------------
# Forward pass (mirrors Bert.forward: context, seq_len, mask -> logits)
# ---------------------------------------------------------------------------
def bert_forward(params, context, seq_len, mask):
    del seq_len  # unused by the reference forward as well
    B, S = context.shape
    n_shards = BATCH_SHARDS if (B % BATCH_SHARDS == 0) else 1
    b_per = B // n_shards
    t_shard = b_per * S                                       # tokens per shard

    # TODO(synk): embedding gathers (word/pos/type) stay in wrapper JAX —
    # a data-dependent gather of a tiny table has no useful Pallas form here.
    word = jnp.take(params["word_emb"], context, axis=0)      # [B, S, H]
    pos = params["pos_emb"][:S][None, :, :]                   # [1, S, H]
    tok = params["type_emb"][0][None, None, :]                # token_type_id == 0
    x_emb = ((word + pos + tok)
             .astype(jnp.float32)
             .reshape(n_shards, t_shard, HIDDEN))             # [Ns, Ts, H]

    # Additive 2-D mask per shard: block-diagonal over the sequences in the
    # shard, plus the key padding mask (0 keep / -1e9 pad). Computed ONCE.
    mask_f = mask.astype(jnp.float32).reshape(n_shards, b_per, S)
    eye = jnp.eye(b_per, dtype=jnp.float32)
    keep = (eye[None, :, None, :, None]                       # [1, Bp, 1, Bp, 1]
            * mask_f[:, None, None, :, :])                    # [Ns, 1, 1, Bp, S]
    keep = jnp.broadcast_to(keep, (n_shards, b_per, S, b_per, S))
    add_mask2d = ((keep - 1.0) * 1e9).reshape(n_shards, t_shard, t_shard)

    # -----------------------------------------------------------------------
    # Fused kernel (closure over static b_per / S)
    # -----------------------------------------------------------------------
    def bert_fused_kernel(
        x_emb_ref, add_mask_ref, emb_g_ref, emb_b_ref,
        wqkv_ref, bqkv_ref, wo_ref, bo_ref, ln1g_ref, ln1b_ref,
        w1_ref, b1_ref, w2_ref, b2_ref, ln2g_ref, ln2b_ref,
        pool_w_ref, pool_b_ref, fc_w_ref, fc_b_ref,
        logits_ref, x_scr,
    ):
        l = pl.program_id(1)

        # --- layer 0 only: embedding LayerNorm into the resident activation ---
        @pl.when(l == 0)
        def _():
            xe = x_emb_ref[...].astype(jnp.float32)           # [Ts, H]
            x_scr[...] = _layer_norm(xe, emb_g_ref[...], emb_b_ref[...])

        x = x_scr[...]                                        # [Ts, H] f32

        # --- Multi-head self-attention (all 2-D, flat token axis) ------------
        qkv = (jnp.dot(x.astype(jnp.bfloat16), wqkv_ref[...],
                       preferred_element_type=jnp.float32)
               + bqkv_ref[...])                               # [Ts, 3H] f32
        scale = 1.0 / math.sqrt(HEAD_DIM)
        q2d = qkv[:, 0:HIDDEN] * scale
        k2d = qkv[:, HIDDEN:2 * HIDDEN]
        v2d = qkv[:, 2 * HIDDEN:3 * HIDDEN]

        add_mask = add_mask_ref[...]                          # [Ts, Ts]

        ctx_heads = []
        for h in range(NUM_HEADS):                            # lane-axis slices only
            lo = h * HEAD_DIM
            qh = q2d[:, lo:lo + HEAD_DIM].astype(jnp.bfloat16)
            kh = k2d[:, lo:lo + HEAD_DIM].astype(jnp.bfloat16)
            vh = v2d[:, lo:lo + HEAD_DIM].astype(jnp.bfloat16)
            # s = qh @ kh^T via dot_general (no explicit transpose)
            s = jax.lax.dot_general(
                qh, kh, (((1,), (1,)), ((), ())),
                preferred_element_type=jnp.float32) + add_mask
            m = jnp.max(s, axis=-1, keepdims=True)
            e = jnp.exp(s - m)
            p = e / jnp.sum(e, axis=-1, keepdims=True)        # exact softmax
            ctx_heads.append(jnp.dot(p.astype(jnp.bfloat16), vh,
                                     preferred_element_type=jnp.float32))
        # Lane-axis concat is free inside a single 128-lane tile (HIDDEN=32).
        ctx = jnp.concatenate(ctx_heads, axis=-1)             # [Ts, H]

        # Single output projection against the un-split wo.
        attn = (jnp.dot(ctx.astype(jnp.bfloat16), wo_ref[...],
                        preferred_element_type=jnp.float32)
                + bo_ref[...])
        h1 = _layer_norm(x + attn, ln1g_ref[...], ln1b_ref[...])

        # --- Feed-forward -----------------------------------------------------
        f = (jnp.dot(h1.astype(jnp.bfloat16), w1_ref[...],
                     preferred_element_type=jnp.float32) + b1_ref[...])
        f = _gelu(f)
        f = (jnp.dot(f.astype(jnp.bfloat16), w2_ref[...],
                     preferred_element_type=jnp.float32) + b2_ref[...])
        out = _layer_norm(h1 + f, ln2g_ref[...], ln2b_ref[...])
        x_scr[...] = out

        # --- last layer only: CLS -> pooler tanh -> FC head -------------------
        @pl.when(l == NUM_LAYERS - 1)
        def _():
            if b_per == 1:
                cls = out[0:1, :]                             # [1, H], static slice
            else:
                # strided row slice (rows 0, S, 2S, ...), no [B,S,H] reshape
                cls = x_scr[pl.ds(0, b_per, stride=S), :]
            pooled = jnp.tanh(
                jnp.dot(cls.astype(jnp.bfloat16), pool_w_ref[...],
                        preferred_element_type=jnp.float32) + pool_b_ref[...])
            logits = (jnp.dot(pooled.astype(jnp.bfloat16), fc_w_ref[...],
                              preferred_element_type=jnp.float32) + fc_b_ref[...])
            logits_ref[...] = logits.astype(logits_ref.dtype)

    in_specs = [
        _shard_spec((n_shards, t_shard, HIDDEN)),             # x_emb
        _shard_spec((n_shards, t_shard, t_shard)),            # add_mask2d
        _const_spec((1, HIDDEN)),                             # emb_ln_g
        _const_spec((1, HIDDEN)),                             # emb_ln_b
        _layer_spec((NUM_LAYERS, HIDDEN, 3 * HIDDEN)),        # wqkv (bf16)
        _layer_spec((NUM_LAYERS, 1, 3 * HIDDEN)),             # bqkv
        _layer_spec((NUM_LAYERS, HIDDEN, HIDDEN)),            # wo (bf16, un-split)
        _layer_spec((NUM_LAYERS, 1, HIDDEN)),                 # bo
        _layer_spec((NUM_LAYERS, 1, HIDDEN)),                 # ln1_g
        _layer_spec((NUM_LAYERS, 1, HIDDEN)),                 # ln1_b
        _layer_spec((NUM_LAYERS, HIDDEN, INTERMEDIATE)),      # w1 (bf16)
        _layer_spec((NUM_LAYERS, 1, INTERMEDIATE)),           # b1
        _layer_spec((NUM_LAYERS, INTERMEDIATE, HIDDEN)),      # w2 (bf16)
        _layer_spec((NUM_LAYERS, 1, HIDDEN)),                 # b2
        _layer_spec((NUM_LAYERS, 1, HIDDEN)),                 # ln2_g
        _layer_spec((NUM_LAYERS, 1, HIDDEN)),                 # ln2_b
        _const_spec((HIDDEN, HIDDEN)),                        # pool_w (bf16)
        _const_spec((1, HIDDEN)),                             # pool_b
        _const_spec((HIDDEN, NUM_CLASSES)),                   # fc_w (bf16)
        _const_spec((1, NUM_CLASSES)),                        # fc_b
    ]

    grid_spec = pltpu.PrefetchScalarGridSpec(
        num_scalar_prefetch=0,
        grid=(n_shards, NUM_LAYERS),
        in_specs=in_specs,
        out_specs=pl.BlockSpec((None, b_per, NUM_CLASSES), lambda b, l: (b, 0, 0)),
        scratch_shapes=[pltpu.VMEM((t_shard, HIDDEN), jnp.float32)],  # resident act.
    )

    logits = pl.pallas_call(
        bert_fused_kernel,
        out_shape=jax.ShapeDtypeStruct((n_shards, b_per, NUM_CLASSES), jnp.float32),
        grid_spec=grid_spec,
        compiler_params=pltpu.CompilerParams(
            # batch shards across TensorCores (v7x), layer axis carries state
            dimension_semantics=("parallel", "arbitrary"),
            # explicit scoped-VMEM budget (scaling hygiene; v5e default is 16 MiB)
            vmem_limit_bytes=32 * 1024 * 1024,
        ),
    )(
        x_emb, add_mask2d, params["emb_ln_g"], params["emb_ln_b"],
        params["wqkv"], params["bqkv"], params["wo"], params["bo"],
        params["ln1_g"], params["ln1_b"],
        params["w1"], params["b1"], params["w2"], params["b2"],
        params["ln2_g"], params["ln2_b"],
        params["pool_w"], params["pool_b"], params["fc_w"], params["fc_b"],
    )
    return logits.reshape(B, NUM_CLASSES)


if __name__ == "__main__":
    key = jax.random.PRNGKey(0)
    pkey, ckey = jax.random.split(key)

    params = init_params(pkey)

    B, S = 2, 8
    context = jax.random.randint(ckey, (B, S), 0, VOCAB, dtype=jnp.int32)
    seq_len = jnp.array([S, S - 2], dtype=jnp.int32)
    mask = jnp.array([[1] * S, [1] * (S - 2) + [0] * 2], dtype=jnp.int32)

    logits = bert_forward(params, context, seq_len, mask)
    jax.block_until_ready(logits)
    assert logits.shape == (B, NUM_CLASSES)
    print("KERNEL_OK")
</pallas_src>

<mosaic_0001>
module attributes {stable_mosaic.version = 11 : i64} {
  func.func @bert_fused_kernel(%arg0: i32, %arg1: i32, %arg2: memref<1x8x32xf32, #tpu.memory_space<vmem>>, %arg3: memref<1x8x8xf32, #tpu.memory_space<vmem>>, %arg4: memref<1x32xf32, #tpu.memory_space<vmem>>, %arg5: memref<1x32xf32, #tpu.memory_space<vmem>>, %arg6: memref<1x32x96xbf16, #tpu.memory_space<vmem>>, %arg7: memref<1x1x96xf32, #tpu.memory_space<vmem>>, %arg8: memref<1x32x32xbf16, #tpu.memory_space<vmem>>, %arg9: memref<1x1x32xf32, #tpu.memory_space<vmem>>, %arg10: memref<1x1x32xf32, #tpu.memory_space<vmem>>, %arg11: memref<1x1x32xf32, #tpu.memory_space<vmem>>, %arg12: memref<1x32x64xbf16, #tpu.memory_space<vmem>>, %arg13: memref<1x1x64xf32, #tpu.memory_space<vmem>>, %arg14: memref<1x64x32xbf16, #tpu.memory_space<vmem>>, %arg15: memref<1x1x32xf32, #tpu.memory_space<vmem>>, %arg16: memref<1x1x32xf32, #tpu.memory_space<vmem>>, %arg17: memref<1x1x32xf32, #tpu.memory_space<vmem>>, %arg18: memref<32x32xbf16, #tpu.memory_space<vmem>>, %arg19: memref<1x32xf32, #tpu.memory_space<vmem>>, %arg20: memref<32x3xbf16, #tpu.memory_space<vmem>>, %arg21: memref<1x3xf32, #tpu.memory_space<vmem>>, %arg22: memref<1x1x3xf32, #tpu.memory_space<vmem>>, %arg23: memref<8x32xf32, #tpu.memory_space<vmem>>) attributes {dimension_semantics = [#tpu.dimension_semantics<parallel>, #tpu.dimension_semantics<arbitrary>], iteration_bounds = array<i64: 2, 2>, scalar_prefetch = 0 : i64, scratch_operands = 1 : i64, tpu.core_type = #tpu.core_type<tc>, window_params = [{transform_indices = @transform_0, window_bounds = array<i64: 1, 8, 32>}, {transform_indices = @transform_1, window_bounds = array<i64: 1, 8, 8>}, {pipeline_mode = #tpu.pipeline_mode<synchronous>, transform_indices = @transform_2, window_bounds = array<i64: 1, 32>}, {pipeline_mode = #tpu.pipeline_mode<synchronous>, transform_indices = @transform_3, window_bounds = array<i64: 1, 32>}, {transform_indices = @transform_4, window_bounds = array<i64: 1, 32, 96>}, {transform_indices = @transform_5, window_bounds = array<i64: 1, 1, 96>}, {transform_indices = @transform_6, window_bounds = array<i64: 1, 32, 32>}, {transform_indices = @transform_7, window_bounds = array<i64: 1, 1, 32>}, {transform_indices = @transform_8, window_bounds = array<i64: 1, 1, 32>}, {transform_indices = @transform_9, window_bounds = array<i64: 1, 1, 32>}, {transform_indices = @transform_10, window_bounds = array<i64: 1, 32, 64>}, {transform_indices = @transform_11, window_bounds = array<i64: 1, 1, 64>}, {transform_indices = @transform_12, window_bounds = array<i64: 1, 64, 32>}, {transform_indices = @transform_13, window_bounds = array<i64: 1, 1, 32>}, {transform_indices = @transform_14, window_bounds = array<i64: 1, 1, 32>}, {transform_indices = @transform_15, window_bounds = array<i64: 1, 1, 32>}, {pipeline_mode = #tpu.pipeline_mode<synchronous>, transform_indices = @transform_16, window_bounds = array<i64: 32, 32>}, {pipeline_mode = #tpu.pipeline_mode<synchronous>, transform_indices = @transform_17, window_bounds = array<i64: 1, 32>}, {pipeline_mode = #tpu.pipeline_mode<synchronous>, transform_indices = @transform_18, window_bounds = array<i64: 32, 3>}, {pipeline_mode = #tpu.pipeline_mode<synchronous>, transform_indices = @transform_19, window_bounds = array<i64: 1, 3>}, {transform_indices = @transform_20, window_bounds = array<i64: 1, 1, 3>}]} {
    %c0_i32 = arith.constant 0 : i32
    %0 = arith.cmpi eq, %arg1, %c0_i32 : i32
    %1 = arith.extui %0 : i1 to i32
    %c0_i32_0 = arith.constant 0 : i32
    %2 = arith.cmpi ne, %1, %c0_i32_0 : i32
    scf.if %2 {
      %c0_70 = arith.constant 0 : index
      %c0_71 = arith.constant 0 : index
      %c0_72 = arith.constant 0 : index
      %153 = vector.load %arg2[%c0_70, %c0_71, %c0_72] : memref<1x8x32xf32, #tpu.memory_space<vmem>>, vector<1x8x32xf32>
      %154 = vector.shape_cast %153 : vector<1x8x32xf32> to vector<8x32xf32>
      %c0_73 = arith.constant 0 : index
      %c0_74 = arith.constant 0 : index
      %155 = vector.load %arg4[%c0_73, %c0_74] : memref<1x32xf32, #tpu.memory_space<vmem>>, vector<1x32xf32>
      %c0_75 = arith.constant 0 : index
      %c0_76 = arith.constant 0 : index
      %156 = vector.load %arg5[%c0_75, %c0_76] : memref<1x32xf32, #tpu.memory_space<vmem>>, vector<1x32xf32>
      %cst_77 = arith.constant dense<0.000000e+00> : vector<8xf32>
      %157 = vector.multi_reduction <add>, %154, %cst_77 [1] : vector<8x32xf32> to vector<8xf32>
      %158 = vector.shape_cast %157 : vector<8xf32> to vector<8x1xf32>
      %cst_78 = arith.constant 3.200000e+01 : f32
      %159 = vector.broadcast %cst_78 : f32 to vector<8x1xf32>
      %160 = arith.divf %158, %159 : vector<8x1xf32>
      %161 = vector.broadcast %160 : vector<8x1xf32> to vector<8x32xf32>
      %162 = arith.subf %154, %161 : vector<8x32xf32>
      %163 = arith.mulf %162, %162 : vector<8x32xf32>
      %cst_79 = arith.constant dense<0.000000e+00> : vector<8xf32>
      %164 = vector.multi_reduction <add>, %163, %cst_79 [1] : vector<8x32xf32> to vector<8xf32>
      %165 = vector.shape_cast %164 : vector<8xf32> to vector<8x1xf32>
      %cst_80 = arith.constant 3.200000e+01 : f32
      %166 = vector.broadcast %cst_80 : f32 to vector<8x1xf32>
      %167 = arith.divf %165, %166 : vector<8x1xf32>
      %168 = vector.broadcast %160 : vector<8x1xf32> to vector<8x32xf32>
      %169 = arith.subf %154, %168 : vector<8x32xf32>
      %cst_81 = arith.constant 9.99999996E-13 : f32
      %170 = vector.broadcast %cst_81 : f32 to vector<8x1xf32>
      %171 = arith.addf %167, %170 : vector<8x1xf32>
      %172 = math.rsqrt %171 : vector<8x1xf32>
      %173 = vector.broadcast %172 : vector<8x1xf32> to vector<8x32xf32>
      %174 = arith.mulf %169, %173 : vector<8x32xf32>
      %175 = vector.broadcast %155 : vector<1x32xf32> to vector<8x32xf32>
      %176 = arith.mulf %174, %175 : vector<8x32xf32>
      %177 = vector.broadcast %156 : vector<1x32xf32> to vector<8x32xf32>
      %178 = arith.addf %176, %177 : vector<8x32xf32>
      %c0_82 = arith.constant 0 : index
      %c0_83 = arith.constant 0 : index
      %179 = vector.load %arg23[%c0_82, %c0_83] : memref<8x32xf32, #tpu.memory_space<vmem>>, vector<8x32xf32>
      tpu.vector_store %arg23[%c0_82, %c0_83], %178 {strides = array<i32>} : memref<8x32xf32, #tpu.memory_space<vmem>>, vector<8x32xf32>,
    } else {
    }
    %c0 = arith.constant 0 : index
    %c0_1 = arith.constant 0 : index
    %3 = vector.load %arg23[%c0, %c0_1] : memref<8x32xf32, #tpu.memory_space<vmem>>, vector<8x32xf32>
    %4 = arith.truncf %3 : vector<8x32xf32> to vector<8x32xbf16>
    %c0_2 = arith.constant 0 : index
    %c0_3 = arith.constant 0 : index
    %c0_4 = arith.constant 0 : index
    %5 = vector.load %arg6[%c0_2, %c0_3, %c0_4] : memref<1x32x96xbf16, #tpu.memory_space<vmem>>, vector<1x32x96xbf16>
    %6 = vector.shape_cast %5 : vector<1x32x96xbf16> to vector<32x96xbf16>
    %cst = arith.constant dense<0.000000e+00> : vector<8x96xf32>
    %7 = tpu.matmul %4, %6, %cst {dimension_numbers = #tpu.dot_dimension_numbers<[1], [0], [0], [1], [0, 0, 1, 1], [], []>} : vector<8x32xbf16>, vector<32x96xbf16>, vector<8x96xf32> -> vector<8x96xf32>
    %c0_5 = arith.constant 0 : index
    %c0_6 = arith.constant 0 : index
    %c0_7 = arith.constant 0 : index
    %8 = vector.load %arg7[%c0_5, %c0_6, %c0_7] : memref<1x1x96xf32, #tpu.memory_space<vmem>>, vector<1x1x96xf32>
    %9 = vector.shape_cast %8 : vector<1x1x96xf32> to vector<1x96xf32>
    %10 = vector.broadcast %9 : vector<1x96xf32> to vector<8x96xf32>
    %11 = arith.addf %7, %10 : vector<8x96xf32>
    %12 = vector.extract_strided_slice %11 {offsets = [0, 0], sizes = [8, 32], strides = [1, 1]} : vector<8x96xf32> to vector<8x32xf32>
    %cst_8 = arith.constant 2.500000e-01 : f32
    %13 = vector.broadcast %cst_8 : f32 to vector<8x32xf32>
    %14 = arith.mulf %12, %13 : vector<8x32xf32>
    %15 = vector.extract_strided_slice %11 {offsets = [0, 32], sizes = [8, 32], strides = [1, 1]} : vector<8x96xf32> to vector<8x32xf32>
    %16 = vector.extract_strided_slice %11 {offsets = [0, 64], sizes = [8, 32], strides = [1, 1]} : vector<8x96xf32> to vector<8x32xf32>
    %c0_9 = arith.constant 0 : index
    %c0_10 = arith.constant 0 : index
    %c0_11 = arith.constant 0 : index
    %17 = vector.load %arg3[%c0_9, %c0_10, %c0_11] : memref<1x8x8xf32, #tpu.memory_space<vmem>>, vector<1x8x8xf32>
    %18 = vector.shape_cast %17 : vector<1x8x8xf32> to vector<8x8xf32>
    %19 = vector.extract_strided_slice %14 {offsets = [0, 0], sizes = [8, 16], strides = [1, 1]} : vector<8x32xf32> to vector<8x16xf32>
    %20 = arith.truncf %19 : vector<8x16xf32> to vector<8x16xbf16>
    %21 = vector.extract_strided_slice %15 {offsets = [0, 0], sizes = [8, 16], strides = [1, 1]} : vector<8x32xf32> to vector<8x16xf32>
    %22 = arith.truncf %21 : vector<8x16xf32> to vector<8x16xbf16>
    %23 = vector.extract_strided_slice %16 {offsets = [0, 0], sizes = [8, 16], strides = [1, 1]} : vector<8x32xf32> to vector<8x16xf32>
    %24 = arith.truncf %23 : vector<8x16xf32> to vector<8x16xbf16>
    %cst_12 = arith.constant dense<0.000000e+00> : vector<8x8xf32>
    %25 = tpu.matmul %20, %22, %cst_12 {dimension_numbers = #tpu.dot_dimension_numbers<[1], [1], [0], [0], [0, 0, 1, 0], [], []>} : vector<8x16xbf16>, vector<8x16xbf16>, vector<8x8xf32> -> vector<8x8xf32>
    %26 = arith.addf %25, %18 : vector<8x8xf32>
    %cst_13 = arith.constant dense<0xFF800000> : vector<8xf32>
    %27 = vector.multi_reduction <maximumf>, %26, %cst_13 [1] : vector<8x8xf32> to vector<8xf32>
    %28 = vector.shape_cast %27 : vector<8xf32> to vector<8x1xf32>
    %29 = vector.broadcast %28 : vector<8x1xf32> to vector<8x8xf32>
    %30 = arith.subf %26, %29 : vector<8x8xf32>
    %31 = math.exp %30 : vector<8x8xf32>
    %cst_14 = arith.constant dense<0.000000e+00> : vector<8xf32>
    %32 = vector.multi_reduction <add>, %31, %cst_14 [1] : vector<8x8xf32> to vector<8xf32>
    %33 = vector.shape_cast %32 : vector<8xf32> to vector<8x1xf32>
    %34 = vector.broadcast %33 : vector<8x1xf32> to vector<8x8xf32>
    %35 = arith.divf %31, %34 : vector<8x8xf32>
    %36 = arith.truncf %35 : vector<8x8xf32> to vector<8x8xbf16>
    %cst_15 = arith.constant dense<0.000000e+00> : vector<8x16xf32>
    %37 = tpu.matmul %36, %24, %cst_15 {dimension_numbers = #tpu.dot_dimension_numbers<[1], [0], [0], [1], [0, 0, 1, 1], [], []>} : vector<8x8xbf16>, vector<8x16xbf16>, vector<8x16xf32> -> vector<8x16xf32>
    %38 = vector.extract_strided_slice %14 {offsets = [0, 16], sizes = [8, 16], strides = [1, 1]} : vector<8x32xf32> to vector<8x16xf32>
    %39 = arith.truncf %38 : vector<8x16xf32> to vector<8x16xbf16>
    %40 = vector.extract_strided_slice %15 {offsets = [0, 16], sizes = [8, 16], strides = [1, 1]} : vector<8x32xf32> to vector<8x16xf32>
    %41 = arith.truncf %40 : vector<8x16xf32> to vector<8x16xbf16>
    %42 = vector.extract_strided_slice %16 {offsets = [0, 16], sizes = [8, 16], strides = [1, 1]} : vector<8x32xf32> to vector<8x16xf32>
    %43 = arith.truncf %42 : vector<8x16xf32> to vector<8x16xbf16>
    %cst_16 = arith.constant dense<0.000000e+00> : vector<8x8xf32>
    %44 = tpu.matmul %39, %41, %cst_16 {dimension_numbers = #tpu.dot_dimension_numbers<[1], [1], [0], [0], [0, 0, 1, 0], [], []>} : vector<8x16xbf16>, vector<8x16xbf16>, vector<8x8xf32> -> vector<8x8xf32>
    %45 = arith.addf %44, %18 : vector<8x8xf32>
    %cst_17 = arith.constant dense<0xFF800000> : vector<8xf32>
    %46 = vector.multi_reduction <maximumf>, %45, %cst_17 [1] : vector<8x8xf32> to vector<8xf32>
    %47 = vector.shape_cast %46 : vector<8xf32> to vector<8x1xf32>
    %48 = vector.broadcast %47 : vector<8x1xf32> to vector<8x8xf32>
    %49 = arith.subf %45, %48 : vector<8x8xf32>
    %50 = math.exp %49 : vector<8x8xf32>
    %cst_18 = arith.constant dense<0.000000e+00> : vector<8xf32>
    %51 = vector.multi_reduction <add>, %50, %cst_18 [1] : vector<8x8xf32> to vector<8xf32>
    %52 = vector.shape_cast %51 : vector<8xf32> to vector<8x1xf32>
    %53 = vector.broadcast %52 : vector<8x1xf32> to vector<8x8xf32>
    %54 = arith.divf %50, %53 : vector<8x8xf32>
    %55 = arith.truncf %54 : vector<8x8xf32> to vector<8x8xbf16>
    %cst_19 = arith.constant dense<0.000000e+00> : vector<8x16xf32>
    %56 = tpu.matmul %55, %43, %cst_19 {dimension_numbers = #tpu.dot_dimension_numbers<[1], [0], [0], [1], [0, 0, 1, 1], [], []>} : vector<8x8xbf16>, vector<8x16xbf16>, vector<8x16xf32> -> vector<8x16xf32>
    %57 = tpu.concatenate %37, %56 in 1 : vector<8x16xf32>, vector<8x16xf32> -> vector<8x32xf32>
    %58 = arith.truncf %57 : vector<8x32xf32> to vector<8x32xbf16>
    %c0_20 = arith.constant 0 : index
    %c0_21 = arith.constant 0 : index
    %c0_22 = arith.constant 0 : index
    %59 = vector.load %arg8[%c0_20, %c0_21, %c0_22] : memref<1x32x32xbf16, #tpu.memory_space<vmem>>, vector<1x32x32xbf16>
    %60 = vector.shape_cast %59 : vector<1x32x32xbf16> to vector<32x32xbf16>
    %cst_23 = arith.constant dense<0.000000e+00> : vector<8x32xf32>
    %61 = tpu.matmul %58, %60, %cst_23 {dimension_numbers = #tpu.dot_dimension_numbers<[1], [0], [0], [1], [0, 0, 1, 1], [], []>} : vector<8x32xbf16>, vector<32x32xbf16>, vector<8x32xf32> -> vector<8x32xf32>
    %c0_24 = arith.constant 0 : index
    %c0_25 = arith.constant 0 : index
    %c0_26 = arith.constant 0 : index
    %62 = vector.load %arg9[%c0_24, %c0_25, %c0_26] : memref<1x1x32xf32, #tpu.memory_space<vmem>>, vector<1x1x32xf32>
    %63 = vector.shape_cast %62 : vector<1x1x32xf32> to vector<1x32xf32>
    %64 = vector.broadcast %63 : vector<1x32xf32> to vector<8x32xf32>
    %65 = arith.addf %61, %64 : vector<8x32xf32>
    %66 = arith.addf %3, %65 : vector<8x32xf32>
    %c0_27 = arith.constant 0 : index
    %c0_28 = arith.constant 0 : index
    %c0_29 = arith.constant 0 : index
    %67 = vector.load %arg10[%c0_27, %c0_28, %c0_29] : memref<1x1x32xf32, #tpu.memory_space<vmem>>, vector<1x1x32xf32>
    %68 = vector.shape_cast %67 : vector<1x1x32xf32> to vector<1x32xf32>
    %c0_30 = arith.constant 0 : index
    %c0_31 = arith.constant 0 : index
    %c0_32 = arith.constant 0 : index
    %69 = vector.load %arg11[%c0_30, %c0_31, %c0_32] : memref<1x1x32xf32, #tpu.memory_space<vmem>>, vector<1x1x32xf32>
    %70 = vector.shape_cast %69 : vector<1x1x32xf32> to vector<1x32xf32>
    %cst_33 = arith.constant dense<0.000000e+00> : vector<8xf32>
    %71 = vector.multi_reduction <add>, %66, %cst_33 [1] : vector<8x32xf32> to vector<8xf32>
    %72 = vector.shape_cast %71 : vector<8xf32> to vector<8x1xf32>
    %cst_34 = arith.constant 3.200000e+01 : f32
    %73 = vector.broadcast %cst_34 : f32 to vector<8x1xf32>
    %74 = arith.divf %72, %73 : vector<8x1xf32>
    %75 = vector.broadcast %74 : vector<8x1xf32> to vector<8x32xf32>
    %76 = arith.subf %66, %75 : vector<8x32xf32>
    %77 = arith.mulf %76, %76 : vector<8x32xf32>
    %cst_35 = arith.constant dense<0.000000e+00> : vector<8xf32>
    %78 = vector.multi_reduction <add>, %77, %cst_35 [1] : vector<8x32xf32> to vector<8xf32>
    %79 = vector.shape_cast %78 : vector<8xf32> to vector<8x1xf32>
    %cst_36 = arith.constant 3.200000e+01 : f32
    %80 = vector.broadcast %cst_36 : f32 to vector<8x1xf32>
    %81 = arith.divf %79, %80 : vector<8x1xf32>
    %82 = vector.broadcast %74 : vector<8x1xf32> to vector<8x32xf32>
    %83 = arith.subf %66, %82 : vector<8x32xf32>
    %cst_37 = arith.constant 9.99999996E-13 : f32
    %84 = vector.broadcast %cst_37 : f32 to vector<8x1xf32>
    %85 = arith.addf %81, %84 : vector<8x1xf32>
    %86 = math.rsqrt %85 : vector<8x1xf32>
    %87 = vector.broadcast %86 : vector<8x1xf32> to vector<8x32xf32>
    %88 = arith.mulf %83, %87 : vector<8x32xf32>
    %89 = vector.broadcast %68 : vector<1x32xf32> to vector<8x32xf32>
    %90 = arith.mulf %88, %89 : vector<8x32xf32>
    %91 = vector.broadcast %70 : vector<1x32xf32> to vector<8x32xf32>
    %92 = arith.addf %90, %91 : vector<8x32xf32>
    %93 = arith.truncf %92 : vector<8x32xf32> to vector<8x32xbf16>
    %c0_38 = arith.constant 0 : index
    %c0_39 = arith.constant 0 : index
    %c0_40 = arith.constant 0 : index
    %94 = vector.load %arg12[%c0_38, %c0_39, %c0_40] : memref<1x32x64xbf16, #tpu.memory_space<vmem>>, vector<1x32x64xbf16>
    %95 = vector.shape_cast %94 : vector<1x32x64xbf16> to vector<32x64xbf16>
    %cst_41 = arith.constant dense<0.000000e+00> : vector<8x64xf32>
    %96 = tpu.matmul %93, %95, %cst_41 {dimension_numbers = #tpu.dot_dimension_numbers<[1], [0], [0], [1], [0, 0, 1, 1], [], []>} : vector<8x32xbf16>, vector<32x64xbf16>, vector<8x64xf32> -> vector<8x64xf32>
    %c0_42 = arith.constant 0 : index
    %c0_43 = arith.constant 0 : index
    %c0_44 = arith.constant 0 : index
    %97 = vector.load %arg13[%c0_42, %c0_43, %c0_44] : memref<1x1x64xf32, #tpu.memory_space<vmem>>, vector<1x1x64xf32>
    %98 = vector.shape_cast %97 : vector<1x1x64xf32> to vector<1x64xf32>
    %99 = vector.broadcast %98 : vector<1x64xf32> to vector<8x64xf32>
    %100 = arith.addf %96, %99 : vector<8x64xf32>
    %cst_45 = arith.constant 5.000000e-01 : f32
    %101 = vector.broadcast %cst_45 : f32 to vector<8x64xf32>
    %102 = arith.mulf %101, %100 : vector<8x64xf32>
    %cst_46 = arith.constant 4.471500e-02 : f32
    %103 = vector.broadcast %cst_46 : f32 to vector<8x64xf32>
    %104 = arith.mulf %103, %100 : vector<8x64xf32>
    %105 = arith.mulf %104, %100 : vector<8x64xf32>
    %106 = arith.mulf %105, %100 : vector<8x64xf32>
    %107 = arith.addf %100, %106 : vector<8x64xf32>
    %cst_47 = arith.constant 0.797884583 : f32
    %108 = vector.broadcast %cst_47 : f32 to vector<8x64xf32>
    %109 = arith.mulf %108, %107 : vector<8x64xf32>
    %110 = math.tanh %109 : vector<8x64xf32>
    %cst_48 = arith.constant 1.000000e+00 : f32
    %111 = vector.broadcast %cst_48 : f32 to vector<8x64xf32>
    %112 = arith.addf %111, %110 : vector<8x64xf32>
    %113 = arith.mulf %102, %112 : vector<8x64xf32>
    %114 = arith.truncf %113 : vector<8x64xf32> to vector<8x64xbf16>
    %c0_49 = arith.constant 0 : index
    %c0_50 = arith.constant 0 : index
    %c0_51 = arith.constant 0 : index
    %115 = vector.load %arg14[%c0_49, %c0_50, %c0_51] : memref<1x64x32xbf16, #tpu.memory_space<vmem>>, vector<1x64x32xbf16>
    %116 = vector.shape_cast %115 : vector<1x64x32xbf16> to vector<64x32xbf16>
    %cst_52 = arith.constant dense<0.000000e+00> : vector<8x32xf32>
    %117 = tpu.matmul %114, %116, %cst_52 {dimension_numbers = #tpu.dot_dimension_numbers<[1], [0], [0], [1], [0, 0, 1, 1], [], []>} : vector<8x64xbf16>, vector<64x32xbf16>, vector<8x32xf32> -> vector<8x32xf32>
    %c0_53 = arith.constant 0 : index
    %c0_54 = arith.constant 0 : index
    %c0_55 = arith.constant 0 : index
    %118 = vector.load %arg15[%c0_53, %c0_54, %c0_55] : memref<1x1x32xf32, #tpu.memory_space<vmem>>, vector<1x1x32xf32>
    %119 = vector.shape_cast %118 : vector<1x1x32xf32> to vector<1x32xf32>
    %120 = vector.broadcast %119 : vector<1x32xf32> to vector<8x32xf32>
    %121 = arith.addf %117, %120 : vector<8x32xf32>
    %122 = arith.addf %92, %121 : vector<8x32xf32>
    %c0_56 = arith.constant 0 : index
    %c0_57 = arith.constant 0 : index
    %c0_58 = arith.constant 0 : index
    %123 = vector.load %arg16[%c0_56, %c0_57, %c0_58] : memref<1x1x32xf32, #tpu.memory_space<vmem>>, vector<1x1x32xf32>
    %124 = vector.shape_cast %123 : vector<1x1x32xf32> to vector<1x32xf32>
    %c0_59 = arith.constant 0 : index
    %c0_60 = arith.constant 0 : index
    %c0_61 = arith.constant 0 : index
    %125 = vector.load %arg17[%c0_59, %c0_60, %c0_61] : memref<1x1x32xf32, #tpu.memory_space<vmem>>, vector<1x1x32xf32>
    %126 = vector.shape_cast %125 : vector<1x1x32xf32> to vector<1x32xf32>
    %cst_62 = arith.constant dense<0.000000e+00> : vector<8xf32>
    %127 = vector.multi_reduction <add>, %122, %cst_62 [1] : vector<8x32xf32> to vector<8xf32>
    %128 = vector.shape_cast %127 : vector<8xf32> to vector<8x1xf32>
    %cst_63 = arith.constant 3.200000e+01 : f32
    %129 = vector.broadcast %cst_63 : f32 to vector<8x1xf32>
    %130 = arith.divf %128, %129 : vector<8x1xf32>
    %131 = vector.broadcast %130 : vector<8x1xf32> to vector<8x32xf32>
    %132 = arith.subf %122, %131 : vector<8x32xf32>
    %133 = arith.mulf %132, %132 : vector<8x32xf32>
    %cst_64 = arith.constant dense<0.000000e+00> : vector<8xf32>
    %134 = vector.multi_reduction <add>, %133, %cst_64 [1] : vector<8x32xf32> to vector<8xf32>
    %135 = vector.shape_cast %134 : vector<8xf32> to vector<8x1xf32>
    %cst_65 = arith.constant 3.200000e+01 : f32
    %136 = vector.broadcast %cst_65 : f32 to vector<8x1xf32>
    %137 = arith.divf %135, %136 : vector<8x1xf32>
    %138 = vector.broadcast %130 : vector<8x1xf32> to vector<8x32xf32>
    %139 = arith.subf %122, %138 : vector<8x32xf32>
    %cst_66 = arith.constant 9.99999996E-13 : f32
    %140 = vector.broadcast %cst_66 : f32 to vector<8x1xf32>
    %141 = arith.addf %137, %140 : vector<8x1xf32>
    %142 = math.rsqrt %141 : vector<8x1xf32>
    %143 = vector.broadcast %142 : vector<8x1xf32> to vector<8x32xf32>
    %144 = arith.mulf %139, %143 : vector<8x32xf32>
    %145 = vector.broadcast %124 : vector<1x32xf32> to vector<8x32xf32>
    %146 = arith.mulf %144, %145 : vector<8x32xf32>
    %147 = vector.broadcast %126 : vector<1x32xf32> to vector<8x32xf32>
    %148 = arith.addf %146, %147 : vector<8x32xf32>
    %c0_67 = arith.constant 0 : index
    %c0_68 = arith.constant 0 : index
    %149 = vector.load %arg23[%c0_67, %c0_68] : memref<8x32xf32, #tpu.memory_space<vmem>>, vector<8x32xf32>
    tpu.vector_store %arg23[%c0_67, %c0_68], %148 {strides = array<i32>} : memref<8x32xf32, #tpu.memory_space<vmem>>, vector<8x32xf32>,
    %c1_i32 = arith.constant 1 : i32
    %150 = arith.cmpi eq, %arg1, %c1_i32 : i32
    %151 = arith.extui %150 : i1 to i32
    %c0_i32_69 = arith.constant 0 : i32
    %152 = arith.cmpi ne, %151, %c0_i32_69 : i32
    scf.if %152 {
      %153 = vector.extract_strided_slice %148 {offsets = [0, 0], sizes = [1, 32], strides = [1, 1]} : vector<8x32xf32> to vector<1x32xf32>
      %154 = arith.truncf %153 : vector<1x32xf32> to vector<1x32xbf16>
      %c0_70 = arith.constant 0 : index
      %c0_71 = arith.constant 0 : index
      %155 = vector.load %arg18[%c0_70, %c0_71] : memref<32x32xbf16, #tpu.memory_space<vmem>>, vector<32x32xbf16>
      %cst_72 = arith.constant dense<0.000000e+00> : vector<1x32xf32>
      %156 = tpu.matmul %154, %155, %cst_72 {dimension_numbers = #tpu.dot_dimension_numbers<[1], [0], [0], [1], [0, 0, 1, 1], [], []>} : vector<1x32xbf16>, vector<32x32xbf16>, vector<1x32xf32> -> vector<1x32xf32>
      %c0_73 = arith.constant 0 : index
      %c0_74 = arith.constant 0 : index
      %157 = vector.load %arg19[%c0_73, %c0_74] : memref<1x32xf32, #tpu.memory_space<vmem>>, vector<1x32xf32>
      %158 = arith.addf %156, %157 : vector<1x32xf32>
      %159 = math.tanh %158 : vector<1x32xf32>
      %160 = arith.truncf %159 : vector<1x32xf32> to vector<1x32xbf16>
      %c0_75 = arith.constant 0 : index
      %c0_76 = arith.constant 0 : index
      %161 = vector.load %arg20[%c0_75, %c0_76] : memref<32x3xbf16, #tpu.memory_space<vmem>>, vector<32x3xbf16>
      %cst_77 = arith.constant dense<0.000000e+00> : vector<1x3xf32>
      %162 = tpu.matmul %160, %161, %cst_77 {dimension_numbers = #tpu.dot_dimension_numbers<[1], [0], [0], [1], [0, 0, 1, 1], [], []>} : vector<1x32xbf16>, vector<32x3xbf16>, vector<1x3xf32> -> vector<1x3xf32>
      %c0_78 = arith.constant 0 : index
      %c0_79 = arith.constant 0 : index
      %163 = vector.load %arg21[%c0_78, %c0_79] : memref<1x3xf32, #tpu.memory_space<vmem>>, vector<1x3xf32>
      %164 = arith.addf %162, %163 : vector<1x3xf32>
      %c0_80 = arith.constant 0 : index
      %c0_81 = arith.constant 0 : index
      %c0_82 = arith.constant 0 : index
      %165 = vector.load %arg22[%c0_80, %c0_81, %c0_82] : memref<1x1x3xf32, #tpu.memory_space<vmem>>, vector<1x1x3xf32>
      %166 = vector.shape_cast %165 : vector<1x1x3xf32> to vector<1x3xf32>
      %167 = vector.shape_cast %164 : vector<1x3xf32> to vector<1x1x3xf32>
      tpu.vector_store %arg22[%c0_80, %c0_81, %c0_82], %167 {strides = array<i32>} : memref<1x1x3xf32, #tpu.memory_space<vmem>>, vector<1x1x3xf32>,
    } else {
    }
    return
  }
  func.func @transform_0(%arg0: i32, %arg1: i32) -> (i32, i32, i32) {
    %c0_i32 = arith.constant 0 : i32
    %c0_i32_0 = arith.constant 0 : i32
    %c0_i32_1 = arith.constant 0 : i32
    return %arg0, %c0_i32, %c0_i32_0 : i32, i32, i32
  }
  func.func @transform_1(%arg0: i32, %arg1: i32) -> (i32, i32, i32) {
    %c0_i32 = arith.constant 0 : i32
    %c0_i32_0 = arith.constant 0 : i32
    %c0_i32_1 = arith.constant 0 : i32
    return %arg0, %c0_i32, %c0_i32_0 : i32, i32, i32
  }
  func.func @transform_2(%arg0: i32, %arg1: i32) -> (i32, i32) {
    %c0_i32 = arith.constant 0 : i32
    %c0_i32_0 = arith.constant 0 : i32
    %c0_i32_1 = arith.constant 0 : i32
    return %c0_i32, %c0_i32_0 : i32, i32
  }
  func.func @transform_3(%arg0: i32, %arg1: i32) -> (i32, i32) {
    %c0_i32 = arith.constant 0 : i32
    %c0_i32_0 = arith.constant 0 : i32
    %c0_i32_1 = arith.constant 0 : i32
    return %c0_i32, %c0_i32_0 : i32, i32
  }
  func.func @transform_4(%arg0: i32, %arg1: i32) -> (i32, i32, i32) {
    %c0_i32 = arith.constant 0 : i32
    %c0_i32_0 = arith.constant 0 : i32
    %c0_i32_1 = arith.constant 0 : i32
    return %arg1, %c0_i32, %c0_i32_0 : i32, i32, i32
  }
  func.func @transform_5(%arg0: i32, %arg1: i32) -> (i32, i32, i32) {
    %c0_i32 = arith.constant 0 : i32
    %c0_i32_0 = arith.constant 0 : i32
    %c0_i32_1 = arith.constant 0 : i32
    return %arg1, %c0_i32, %c0_i32_0 : i32, i32, i32
  }
  func.func @transform_6(%arg0: i32, %arg1: i32) -> (i32, i32, i32) {
    %c0_i32 = arith.constant 0 : i32
    %c0_i32_0 = arith.constant 0 : i32
    %c0_i32_1 = arith.constant 0 : i32
    return %arg1, %c0_i32, %c0_i32_0 : i32, i32, i32
  }
  func.func @transform_7(%arg0: i32, %arg1: i32) -> (i32, i32, i32) {
    %c0_i32 = arith.constant 0 : i32
    %c0_i32_0 = arith.constant 0 : i32
    %c0_i32_1 = arith.constant 0 : i32
    return %arg1, %c0_i32, %c0_i32_0 : i32, i32, i32
  }
  func.func @transform_8(%arg0: i32, %arg1: i32) -> (i32, i32, i32) {
    %c0_i32 = arith.constant 0 : i32
    %c0_i32_0 = arith.constant 0 : i32
    %c0_i32_1 = arith.constant 0 : i32
    return %arg1, %c0_i32, %c0_i32_0 : i32, i32, i32
  }
  func.func @transform_9(%arg0: i32, %arg1: i32) -> (i32, i32, i32) {
    %c0_i32 = arith.constant 0 : i32
    %c0_i32_0 = arith.constant 0 : i32
    %c0_i32_1 = arith.constant 0 : i32
    return %arg1, %c0_i32, %c0_i32_0 : i32, i32, i32
  }
  func.func @transform_10(%arg0: i32, %arg1: i32) -> (i32, i32, i32) {
    %c0_i32 = arith.constant 0 : i32
    %c0_i32_0 = arith.constant 0 : i32
    %c0_i32_1 = arith.constant 0 : i32
    return %arg1, %c0_i32, %c0_i32_0 : i32, i32, i32
  }
  func.func @transform_11(%arg0: i32, %arg1: i32) -> (i32, i32, i32) {
    %c0_i32 = arith.constant 0 : i32
    %c0_i32_0 = arith.constant 0 : i32
    %c0_i32_1 = arith.constant 0 : i32
    return %arg1, %c0_i32, %c0_i32_0 : i32, i32, i32
  }
  func.func @transform_12(%arg0: i32, %arg1: i32) -> (i32, i32, i32) {
    %c0_i32 = arith.constant 0 : i32
    %c0_i32_0 = arith.constant 0 : i32
    %c0_i32_1 = arith.constant 0 : i32
    return %arg1, %c0_i32, %c0_i32_0 : i32, i32, i32
  }
  func.func @transform_13(%arg0: i32, %arg1: i32) -> (i32, i32, i32) {
    %c0_i32 = arith.constant 0 : i32
    %c0_i32_0 = arith.constant 0 : i32
    %c0_i32_1 = arith.constant 0 : i32
    return %arg1, %c0_i32, %c0_i32_0 : i32, i32, i32
  }
  func.func @transform_14(%arg0: i32, %arg1: i32) -> (i32, i32, i32) {
    %c0_i32 = arith.constant 0 : i32
    %c0_i32_0 = arith.constant 0 : i32
    %c0_i32_1 = arith.constant 0 : i32
    return %arg1, %c0_i32, %c0_i32_0 : i32, i32, i32
  }
  func.func @transform_15(%arg0: i32, %arg1: i32) -> (i32, i32, i32) {
    %c0_i32 = arith.constant 0 : i32
    %c0_i32_0 = arith.constant 0 : i32
    %c0_i32_1 = arith.constant 0 : i32
    return %arg1, %c0_i32, %c0_i32_0 : i32, i32, i32
  }
  func.func @transform_16(%arg0: i32, %arg1: i32) -> (i32, i32) {
    %c0_i32 = arith.constant 0 : i32
    %c0_i32_0 = arith.constant 0 : i32
    %c0_i32_1 = arith.constant 0 : i32
    return %c0_i32, %c0_i32_0 : i32, i32
  }
  func.func @transform_17(%arg0: i32, %arg1: i32) -> (i32, i32) {
    %c0_i32 = arith.constant 0 : i32
    %c0_i32_0 = arith.constant 0 : i32
    %c0_i32_1 = arith.constant 0 : i32
    return %c0_i32, %c0_i32_0 : i32, i32
  }
  func.func @transform_18(%arg0: i32, %arg1: i32) -> (i32, i32) {
    %c0_i32 = arith.constant 0 : i32
    %c0_i32_0 = arith.constant 0 : i32
    %c0_i32_1 = arith.constant 0 : i32
    return %c0_i32, %c0_i32_0 : i32, i32
  }
  func.func @transform_19(%arg0: i32, %arg1: i32) -> (i32, i32) {
    %c0_i32 = arith.constant 0 : i32
    %c0_i32_0 = arith.constant 0 : i32
    %c0_i32_1 = arith.constant 0 : i32
    return %c0_i32, %c0_i32_0 : i32, i32
  }
  func.func @transform_20(%arg0: i32, %arg1: i32) -> (i32, i32, i32) {
    %c0_i32 = arith.constant 0 : i32
    %c0_i32_0 = arith.constant 0 : i32
    %c0_i32_1 = arith.constant 0 : i32
    return %arg0, %c0_i32, %c0_i32_0 : i32, i32, i32
  }
}

</mosaic_0001>

<llo_original>
// kernel: tpu_custom_call.1
$region0: #{tpu_custom_call.1}
  #allocation0 [shape = 'u32[]', space=smem, size = 0x4, offset = 0x4, fixed_abs, tag = 'smem constant byte address 0x4 - core index']
  #allocation1 [shape = 'u32[144,128]{1,0:T(1,128)}', space=vmem, size = 0x12000, scoped, tag = 'internal scratch']
  #allocation2 [shape = 'f32[8,32]{1,0:T(8,128)}', space=vmem, size = 0x1000, scoped, tag = 'scratch operand']
  %s0 = inlined_call_operand.vmem [shape: f32[2,8,32], index: 0, kind: input, shape index: {}]
  %s1 = inlined_call_operand.hbm [shape: f32[2,8,8], index: 1, kind: input, shape index: {}]
  %s2 = inlined_call_operand.vmem [shape: f32[1,32], index: 2, kind: input, shape index: {}]
  %s3 = inlined_call_operand.hbm [shape: f32[1,32], index: 3, kind: input, shape index: {}]
  %s4 = inlined_call_operand.vmem [shape: bf16[2,32,96], index: 4, kind: input, shape index: {}]
  %s5 = inlined_call_operand.vmem [shape: f32[2,1,96], index: 5, kind: input, shape index: {}]
  %s6 = inlined_call_operand.vmem [shape: bf16[2,32,32], index: 6, kind: input, shape index: {}]
  %s7 = inlined_call_operand.hbm [shape: f32[2,1,32], index: 7, kind: input, shape index: {}]
  %s8 = inlined_call_operand.hbm [shape: f32[2,1,32], index: 8, kind: input, shape index: {}]
  %s9 = inlined_call_operand.hbm [shape: f32[2,1,32], index: 9, kind: input, shape index: {}]
  %s10 = inlined_call_operand.vmem [shape: bf16[2,32,64], index: 10, kind: input, shape index: {}]
  %s11 = inlined_call_operand.hbm [shape: f32[2,1,64], index: 11, kind: input, shape index: {}]
  %s12 = inlined_call_operand.vmem [shape: bf16[2,64,32], index: 12, kind: input, shape index: {}]
  %s13 = inlined_call_operand.hbm [shape: f32[2,1,32], index: 13, kind: input, shape index: {}]
  %s14 = inlined_call_operand.vmem [shape: f32[2,1,32], index: 14, kind: input, shape index: {}]
  %s15 = inlined_call_operand.vmem [shape: f32[2,1,32], index: 15, kind: input, shape index: {}]
  %s16 = inlined_call_operand.vmem [shape: bf16[32,32], index: 16, kind: input, shape index: {}]
  %s17 = inlined_call_operand.vmem [shape: f32[1,32], index: 17, kind: input, shape index: {}]
  %s18 = inlined_call_operand.vmem [shape: bf16[32,3], index: 18, kind: input, shape index: {}]
  %s19 = inlined_call_operand.vmem [shape: f32[1,3], index: 19, kind: input, shape index: {}]
  %s20 = inlined_call_operand.hbm [shape: f32[2,1,3], index: 20, kind: output, shape index: {}]
  %s21 = sld [smem:[#allocation0]]
  $region149: #{tpu_custom_call.1} parent=0
    _
  %s23 = ssub.s32 1, %s21
  %s24 = scalar_select 0, %s23, %s21
  $region1: #{tpu_custom_call.1} parent=0
    #allocation3 [shape = 'u8[8192]{0}', space=vmem, size = 0x2000, scoped, tag = 'input window, operand 1']
    #allocation4 [shape = 's32[2]{0}', space=sflag, size = 0x8, scoped, tag = 'scoped memory for tpu_custom_call.1']
    #allocation5 [shape = 's32[2]{0}', space=sflag, size = 0x8, scoped, tag = 'scoped memory for tpu_custom_call.1']
    #allocation6 [shape = 'u8[512]{0}', space=vmem, size = 0x400, scoped, tag = 'input window, operand 3, single buffered']
    #allocation7 [shape = 's32[1]{0}', space=sflag, size = 0x4, scoped, tag = 'scoped memory for tpu_custom_call.1']
    #allocation8 [shape = 'u8[1024]{0}', space=vmem, size = 0x400, scoped, tag = 'input window, operand 7']
    #allocation9 [shape = 'u8[1024]{0}', space=vmem, size = 0x400, scoped, tag = 'input window, operand 8']
    #allocation10 [shape = 'u8[1024]{0}', space=vmem, size = 0x400, scoped, tag = 'input window, operand 9']
    #allocation11 [shape = 'u8[1024]{0}', space=vmem, size = 0x400, scoped, tag = 'input window, operand 11']
    #allocation12 [shape = 'u8[1024]{0}', space=vmem, size = 0x400, scoped, tag = 'input window, operand 13']
    #allocation13 [shape = 'u8[1024]{0}', space=vmem, size = 0x400, scoped, tag = 'output window, operand 0']
    %25 = vsyncpa [#allocation4], 0
    %s26 = scalar_lea.sflag [#allocation4], 1
    %27 = vsyncpa %s26, 0
    %28 = vsyncpa [#allocation7], 0
    %29 = vsyncpa [#allocation5], 0
    %s30 = scalar_lea.sflag [#allocation5], 1
    %31 = vsyncpa %s30, 0
    loop: start=0, step=1, limit=6
    $region2: #{tpu_custom_call.1} parent=1 // loop_pre_header
      _
    $region3: #{tpu_custom_call.1} parent=1 // loop_header
      %s33 = sphi 0, %s37
      %p34 = scmp.ge.s32.totalorder %s33, 6
      %s40 = sphi 0, %s52
      %s41 = sphi 0, %s48
      %s42 = sphi 0, %s40
      %s43 = sphi 0, %s41
      %s44 = sphi 0, %s42
      %s45 = sphi 0, %s43
      %s55 = sphi 0, %s57
      %s58 = sphi 0, %s55
      %s59 = sphi 0, %s58
      %s75 = sphi 0, %s59
      %s81 = sphi 0, %s83
      %s84 = sphi 0, %s81
      %s85 = sphi 0, %s84
      %s101 = sphi 0, %s85
      %s105 = sphi 0, %s105
      %s107 = sphi 0, %s105
      %s108 = sphi 0, %s107
      %s122 = sphi 0, %s108
      %s126 = sphi 0, %s126
      %s128 = sphi 0, %s126
      %s129 = sphi 0, %s128
      %s143 = sphi 0, %s129
      %s149 = sphi 0, %s151
      %s152 = sphi 0, %s149
      %s153 = sphi 0, %s152
      %s169 = sphi 0, %s153
      %s175 = sphi 0, %s177
      %s178 = sphi 0, %s175
      %s179 = sphi 0, %s178
      %s195 = sphi 0, %s179
      %s201 = sphi 0, %s203
      %s204 = sphi 0, %s201
      %s205 = sphi 0, %s204
      %s221 = sphi 0, %s205
      %s227 = sphi 0, %s229
      %s230 = sphi 0, %s227
      %s231 = sphi 0, %s230
      %s247 = sphi 0, %s231
      %s253 = sphi 0, %s255
      %s256 = sphi 0, %s253
      %s257 = sphi 0, %s256
      %s273 = sphi 0, %s257
      %s279 = sphi 0, %s281
      %s282 = sphi 0, %s279
      %s283 = sphi 0, %s282
      %s299 = sphi 0, %s283
      %s305 = sphi 0, %s307
      %s308 = sphi 0, %s305
      %s309 = sphi 0, %s308
      %s325 = sphi 0, %s309
      %s331 = sphi 0, %s333
      %s334 = sphi 0, %s331
      %s335 = sphi 0, %s334
      %s351 = sphi 0, %s335
      %s357 = sphi 0, %s359
      %s360 = sphi 0, %s357
      %s361 = sphi 0, %s360
      %s377 = sphi 0, %s361
      %s383 = sphi 0, %s385
      %s386 = sphi 0, %s383
      %s387 = sphi 0, %s386
      %s403 = sphi 0, %s387
      %s409 = sphi 0, %s411
      %s412 = sphi 0, %s409
      %s413 = sphi 0, %s412
      %s429 = sphi 0, %s413
      %s435 = sphi 0, %s437
      %s438 = sphi 0, %s435
      %s439 = sphi 0, %s438
      %s455 = sphi 0, %s439
      %s459 = sphi 0, %s459
      %s461 = sphi 0, %s459
      %s462 = sphi 0, %s461
      %s476 = sphi 0, %s462
      %s480 = sphi 0, %s480
      %s482 = sphi 0, %s480
      %s483 = sphi 0, %s482
      %s497 = sphi 0, %s483
      %s501 = sphi 0, %s501
      %s503 = sphi 0, %s501
      %s504 = sphi 0, %s503
      %s518 = sphi 0, %s504
      %s522 = sphi 0, %s522
      %s524 = sphi 0, %s522
      %s525 = sphi 0, %s524
      %s539 = sphi 0, %s525
      %s545 = sphi 0, %s547
      %s548 = sphi 0, %s545
      %s549 = sphi 0, %s548
      %s565 = sphi 0, %s549
    $region4: #{tpu_custom_call.1} parent=1 // loop_header_branch
      %36 = sbr.rel (%p34) target = $region8
    $region5: #{tpu_custom_call.1} parent=1 // loop_body
      %s38 = ssub.s32 %s33, 1
      %s39 = ssub.s32 %s33, 2
      %s46 = sadd.s32 1, %s41
      %p47 = scmp.ge.s32.totalorder %s46, 2
      %s48 = scalar_select %p47, 0, %s46
      %s49 = sadd.s32 1, %s40
      %s50 = scalar_select %p47, %s49, %s40
      %p51 = scmp.ge.s32.totalorder %s50, 2
      %s52 = scalar_select %p51, 0, %s50
      %s53 = ssub.s32 %s40, %s52
      %p54 = scmp.eq.s32.totalorder %s53, 0
      %s56 = sadd.s32 %s55, 1
      %s57 = scalar_select %p54, %s55, %s56
      %p60 = pneg %p54
      %p61 = scmp.eq.s32.totalorder %s33, 3
      %p62 = por %p60, %p61
      %p63 = scmp.ne.s32.totalorder %s55, %s58
      %p64 = scmp.eq.s32.totalorder %s33, 0
      %p65 = por %p63, %p64
      %p66 = scmp.ne.s32.totalorder %s55, %s58
      %p67 = scmp.eq.s32.totalorder %s38, 3
      %p68 = por %p66, %p67
      %p69 = scmp.ne.s32.totalorder %s58, %s59
      %p70 = scmp.eq.s32.totalorder %s38, 0
      %p71 = por %p69, %p70
      %p72 = scmp.ne.s32.totalorder %s58, %s59
      %p73 = scmp.eq.s32.totalorder %s39, 3
      %p74 = por %p72, %p73
      %p76 = scmp.ne.s32.totalorder %s59, %s75
      %p77 = scmp.eq.s32.totalorder %s39, 0
      %p78 = por %p76, %p77
      %s79 = ssub.s32 %s40, %s52
      %p80 = scmp.eq.s32.totalorder %s79, 0
      %s82 = sadd.s32 %s81, 1
      %s83 = scalar_select %p80, %s81, %s82
      %p86 = pneg %p80
      %p87 = scmp.eq.s32.totalorder %s33, 3
      %p88 = por %p86, %p87
      %p89 = scmp.ne.s32.totalorder %s81, %s84
      %p90 = scmp.eq.s32.totalorder %s33, 0
      %p91 = por %p89, %p90
      %p92 = scmp.ne.s32.totalorder %s81, %s84
      %p93 = scmp.eq.s32.totalorder %s38, 3
      %p94 = por %p92, %p93
      %p95 = scmp.ne.s32.totalorder %s84, %s85
      %p96 = scmp.eq.s32.totalorder %s38, 0
      %p97 = por %p95, %p96
      %p98 = scmp.ne.s32.totalorder %s84, %s85
      %p99 = scmp.eq.s32.totalorder %s39, 3
      %p100 = por %p98, %p99
      %p102 = scmp.ne.s32.totalorder %s85, %s101
      %p103 = scmp.eq.s32.totalorder %s39, 0
      %p104 = por %p102, %p103
      %s106 = sadd.s32 %s105, 1
      %p109 = scmp.eq.s32.totalorder %s33, 3
      %p110 = scmp.ne.s32.totalorder %s105, %s107
      %p111 = scmp.eq.s32.totalorder %s33, 0
      %p112 = por %p110, %p111
      %p113 = scmp.ne.s32.totalorder %s105, %s107
      %p114 = scmp.eq.s32.totalorder %s38, 3
      %p115 = por %p113, %p114
      %p116 = scmp.ne.s32.totalorder %s107, %s108
      %p117 = scmp.eq.s32.totalorder %s38, 0
      %p118 = por %p116, %p117
      %p119 = scmp.ne.s32.totalorder %s107, %s108
      %p120 = scmp.eq.s32.totalorder %s39, 3
      %p121 = por %p119, %p120
      %p123 = scmp.ne.s32.totalorder %s108, %s122
      %p124 = scmp.eq.s32.totalorder %s39, 0
      %p125 = por %p123, %p124
      %s127 = sadd.s32 %s126, 1
      %p130 = scmp.eq.s32.totalorder %s33, 3
      %p131 = scmp.ne.s32.totalorder %s126, %s128
      %p132 = scmp.eq.s32.totalorder %s33, 0
      %p133 = por %p131, %p132
      %p134 = scmp.ne.s32.totalorder %s126, %s128
      %p135 = scmp.eq.s32.totalorder %s38, 3
      %p136 = por %p134, %p135
      %p137 = scmp.ne.s32.totalorder %s128, %s129
      %p138 = scmp.eq.s32.totalorder %s38, 0
      %p139 = por %p137, %p138
      %p140 = scmp.ne.s32.totalorder %s128, %s129
      %p141 = scmp.eq.s32.totalorder %s39, 3
      %p142 = por %p140, %p141
      %p144 = scmp.ne.s32.totalorder %s129, %s143
      %p145 = scmp.eq.s32.totalorder %s39, 0
      %p146 = por %p144, %p145
      %s147 = ssub.s32 %s41, %s48
      %p148 = scmp.eq.s32.totalorder %s147, 0
      %s150 = sadd.s32 %s149, 1
      %s151 = scalar_select %p148, %s149, %s150
      %p154 = pneg %p148
      %p155 = scmp.eq.s32.totalorder %s33, 3
      %p156 = por %p154, %p155
      %p157 = scmp.ne.s32.totalorder %s149, %s152
      %p158 = scmp.eq.s32.totalorder %s33, 0
      %p159 = por %p157, %p158
      %p160 = scmp.ne.s32.totalorder %s149, %s152
      %p161 = scmp.eq.s32.totalorder %s38, 3
      %p162 = por %p160, %p161
      %p163 = scmp.ne.s32.totalorder %s152, %s153
      %p164 = scmp.eq.s32.totalorder %s38, 0
      %p165 = por %p163, %p164
      %p166 = scmp.ne.s32.totalorder %s152, %s153
      %p167 = scmp.eq.s32.totalorder %s39, 3
      %p168 = por %p166, %p167
      %p170 = scmp.ne.s32.totalorder %s153, %s169
      %p171 = scmp.eq.s32.totalorder %s39, 0
      %p172 = por %p170, %p171
      %s173 = ssub.s32 %s41, %s48
      %p174 = scmp.eq.s32.totalorder %s173, 0
      %s176 = sadd.s32 %s175, 1
      %s177 = scalar_select %p174, %s175, %s176
      %p180 = pneg %p174
      %p181 = scmp.eq.s32.totalorder %s33, 3
      %p182 = por %p180, %p181
      %p183 = scmp.ne.s32.totalorder %s175, %s178
      %p184 = scmp.eq.s32.totalorder %s33, 0
      %p185 = por %p183, %p184
      %p186 = scmp.ne.s32.totalorder %s175, %s178
      %p187 = scmp.eq.s32.totalorder %s38, 3
      %p188 = por %p186, %p187
      %p189 = scmp.ne.s32.totalorder %s178, %s179
      %p190 = scmp.eq.s32.totalorder %s38, 0
      %p191 = por %p189, %p190
      %p192 = scmp.ne.s32.totalorder %s178, %s179
      %p193 = scmp.eq.s32.totalorder %s39, 3
      %p194 = por %p192, %p193
      %p196 = scmp.ne.s32.totalorder %s179, %s195
      %p197 = scmp.eq.s32.totalorder %s39, 0
      %p198 = por %p196, %p197
      %s199 = ssub.s32 %s41, %s48
      %p200 = scmp.eq.s32.totalorder %s199, 0
      %s202 = sadd.s32 %s201, 1
      %s203 = scalar_select %p200, %s201, %s202
      %p206 = pneg %p200
      %p207 = scmp.eq.s32.totalorder %s33, 3
      %p208 = por %p206, %p207
      %p209 = scmp.ne.s32.totalorder %s201, %s204
      %p210 = scmp.eq.s32.totalorder %s33, 0
      %p211 = por %p209, %p210
      %p212 = scmp.ne.s32.totalorder %s201, %s204
      %p213 = scmp.eq.s32.totalorder %s38, 3
      %p214 = por %p212, %p213
      %p215 = scmp.ne.s32.totalorder %s204, %s205
      %p216 = scmp.eq.s32.totalorder %s38, 0
      %p217 = por %p215, %p216
      %p218 = scmp.ne.s32.totalorder %s204, %s205
      %p219 = scmp.eq.s32.totalorder %s39, 3
      %p220 = por %p218, %p219
      %p222 = scmp.ne.s32.totalorder %s205, %s221
      %p223 = scmp.eq.s32.totalorder %s39, 0
      %p224 = por %p222, %p223
      %s225 = ssub.s32 %s41, %s48
      %p226 = scmp.eq.s32.totalorder %s225, 0
      %s228 = sadd.s32 %s227, 1
      %s229 = scalar_select %p226, %s227, %s228
      %p232 = pneg %p226
      %p233 = scmp.eq.s32.totalorder %s33, 3
      %p234 = por %p232, %p233
      %p235 = scmp.ne.s32.totalorder %s227, %s230
      %p236 = scmp.eq.s32.totalorder %s33, 0
      %p237 = por %p235, %p236
      %p238 = scmp.ne.s32.totalorder %s227, %s230
      %p239 = scmp.eq.s32.totalorder %s38, 3
      %p240 = por %p238, %p239
      %p241 = scmp.ne.s32.totalorder %s230, %s231
      %p242 = scmp.eq.s32.totalorder %s38, 0
      %p243 = por %p241, %p242
      %p244 = scmp.ne.s32.totalorder %s230, %s231
      %p245 = scmp.eq.s32.totalorder %s39, 3
      %p246 = por %p244, %p245
      %p248 = scmp.ne.s32.totalorder %s231, %s247
      %p249 = scmp.eq.s32.totalorder %s39, 0
      %p250 = por %p248, %p249
      %s251 = ssub.s32 %s41, %s48
      %p252 = scmp.eq.s32.totalorder %s251, 0
      %s254 = sadd.s32 %s253, 1
      %s255 = scalar_select %p252, %s253, %s254
      %p258 = pneg %p252
      %p259 = scmp.eq.s32.totalorder %s33, 3
      %p260 = por %p258, %p259
      %p261 = scmp.ne.s32.totalorder %s253, %s256
      %p262 = scmp.eq.s32.totalorder %s33, 0
      %p263 = por %p261, %p262
      %p264 = scmp.ne.s32.totalorder %s253, %s256
      %p265 = scmp.eq.s32.totalorder %s38, 3
      %p266 = por %p264, %p265
      %p267 = scmp.ne.s32.totalorder %s256, %s257
      %p268 = scmp.eq.s32.totalorder %s38, 0
      %p269 = por %p267, %p268
      %p270 = scmp.ne.s32.totalorder %s256, %s257
      %p271 = scmp.eq.s32.totalorder %s39, 3
      %p272 = por %p270, %p271
      %p274 = scmp.ne.s32.totalorder %s257, %s273
      %p275 = scmp.eq.s32.totalorder %s39, 0
      %p276 = por %p274, %p275
      %s277 = ssub.s32 %s41, %s48
      %p278 = scmp.eq.s32.totalorder %s277, 0
      %s280 = sadd.s32 %s279, 1
      %s281 = scalar_select %p278, %s279, %s280
      %p284 = pneg %p278
      %p285 = scmp.eq.s32.totalorder %s33, 3
      %p286 = por %p284, %p285
      %p287 = scmp.ne.s32.totalorder %s279, %s282
      %p288 = scmp.eq.s32.totalorder %s33, 0
      %p289 = por %p287, %p288
      %p290 = scmp.ne.s32.totalorder %s279, %s282
      %p291 = scmp.eq.s32.totalorder %s38, 3
      %p292 = por %p290, %p291
      %p293 = scmp.ne.s32.totalorder %s282, %s283
      %p294 = scmp.eq.s32.totalorder %s38, 0
      %p295 = por %p293, %p294
      %p296 = scmp.ne.s32.totalorder %s282, %s283
      %p297 = scmp.eq.s32.totalorder %s39, 3
      %p298 = por %p296, %p297
      %p300 = scmp.ne.s32.totalorder %s283, %s299
      %p301 = scmp.eq.s32.totalorder %s39, 0
      %p302 = por %p300, %p301
      %s303 = ssub.s32 %s41, %s48
      %p304 = scmp.eq.s32.totalorder %s303, 0
      %s306 = sadd.s32 %s305, 1
      %s307 = scalar_select %p304, %s305, %s306
      %p310 = pneg %p304
      %p311 = scmp.eq.s32.totalorder %s33, 3
      %p312 = por %p310, %p311
      %p313 = scmp.ne.s32.totalorder %s305, %s308
      %p314 = scmp.eq.s32.totalorder %s33, 0
      %p315 = por %p313, %p314
      %p316 = scmp.ne.s32.totalorder %s305, %s308
      %p317 = scmp.eq.s32.totalorder %s38, 3
      %p318 = por %p316, %p317
      %p319 = scmp.ne.s32.totalorder %s308, %s309
      %p320 = scmp.eq.s32.totalorder %s38, 0
      %p321 = por %p319, %p320
      %p322 = scmp.ne.s32.totalorder %s308, %s309
      %p323 = scmp.eq.s32.totalorder %s39, 3
      %p324 = por %p322, %p323
      %p326 = scmp.ne.s32.totalorder %s309, %s325
      %p327 = scmp.eq.s32.totalorder %s39, 0
      %p328 = por %p326, %p327
      %s329 = ssub.s32 %s41, %s48
      %p330 = scmp.eq.s32.totalorder %s329, 0
      %s332 = sadd.s32 %s331, 1
      %s333 = scalar_select %p330, %s331, %s332
      %p336 = pneg %p330
      %p337 = scmp.eq.s32.totalorder %s33, 3
      %p338 = por %p336, %p337
      %p339 = scmp.ne.s32.totalorder %s331, %s334
      %p340 = scmp.eq.s32.totalorder %s33, 0
      %p341 = por %p339, %p340
      %p342 = scmp.ne.s32.totalorder %s331, %s334
      %p343 = scmp.eq.s32.totalorder %s38, 3
      %p344 = por %p342, %p343
      %p345 = scmp.ne.s32.totalorder %s334, %s335
      %p346 = scmp.eq.s32.totalorder %s38, 0
      %p347 = por %p345, %p346
      %p348 = scmp.ne.s32.totalorder %s334, %s335
      %p349 = scmp.eq.s32.totalorder %s39, 3
      %p350 = por %p348, %p349
      %p352 = scmp.ne.s32.totalorder %s335, %s351
      %p353 = scmp.eq.s32.totalorder %s39, 0
      %p354 = por %p352, %p353
      %s355 = ssub.s32 %s41, %s48
      %p356 = scmp.eq.s32.totalorder %s355, 0
      %s358 = sadd.s32 %s357, 1
      %s359 = scalar_select %p356, %s357, %s358
      %p362 = pneg %p356
      %p363 = scmp.eq.s32.totalorder %s33, 3
      %p364 = por %p362, %p363
      %p365 = scmp.ne.s32.totalorder %s357, %s360
      %p366 = scmp.eq.s32.totalorder %s33, 0
      %p367 = por %p365, %p366
      %p368 = scmp.ne.s32.totalorder %s357, %s360
      %p369 = scmp.eq.s32.totalorder %s38, 3
      %p370 = por %p368, %p369
      %p371 = scmp.ne.s32.totalorder %s360, %s361
      %p372 = scmp.eq.s32.totalorder %s38, 0
      %p373 = por %p371, %p372
      %p374 = scmp.ne.s32.totalorder %s360, %s361
      %p375 = scmp.eq.s32.totalorder %s39, 3
      %p376 = por %p374, %p375
      %p378 = scmp.ne.s32.totalorder %s361, %s377
      %p379 = scmp.eq.s32.totalorder %s39, 0
      %p380 = por %p378, %p379
      %s381 = ssub.s32 %s41, %s48
      %p382 = scmp.eq.s32.totalorder %s381, 0
      %s384 = sadd.s32 %s383, 1
      %s385 = scalar_select %p382, %s383, %s384
      %p388 = pneg %p382
      %p389 = scmp.eq.s32.totalorder %s33, 3
      %p390 = por %p388, %p389
      %p391 = scmp.ne.s32.totalorder %s383, %s386
      %p392 = scmp.eq.s32.totalorder %s33, 0
      %p393 = por %p391, %p392
      %p394 = scmp.ne.s32.totalorder %s383, %s386
      %p395 = scmp.eq.s32.totalorder %s38, 3
      %p396 = por %p394, %p395
      %p397 = scmp.ne.s32.totalorder %s386, %s387
      %p398 = scmp.eq.s32.totalorder %s38, 0
      %p399 = por %p397, %p398
      %p400 = scmp.ne.s32.totalorder %s386, %s387
      %p401 = scmp.eq.s32.totalorder %s39, 3
      %p402 = por %p400, %p401
      %p404 = scmp.ne.s32.totalorder %s387, %s403
      %p405 = scmp.eq.s32.totalorder %s39, 0
      %p406 = por %p404, %p405
      %s407 = ssub.s32 %s41, %s48
      %p408 = scmp.eq.s32.totalorder %s407, 0
      %s410 = sadd.s32 %s409, 1
      %s411 = scalar_select %p408, %s409, %s410
      %p414 = pneg %p408
      %p415 = scmp.eq.s32.totalorder %s33, 3
      %p416 = por %p414, %p415
      %p417 = scmp.ne.s32.totalorder %s409, %s412
      %p418 = scmp.eq.s32.totalorder %s33, 0
      %p419 = por %p417, %p418
      %p420 = scmp.ne.s32.totalorder %s409, %s412
      %p421 = scmp.eq.s32.totalorder %s38, 3
      %p422 = por %p420, %p421
      %p423 = scmp.ne.s32.totalorder %s412, %s413
      %p424 = scmp.eq.s32.totalorder %s38, 0
      %p425 = por %p423, %p424
      %p426 = scmp.ne.s32.totalorder %s412, %s413
      %p427 = scmp.eq.s32.totalorder %s39, 3
      %p428 = por %p426, %p427
      %p430 = scmp.ne.s32.totalorder %s413, %s429
      %p431 = scmp.eq.s32.totalorder %s39, 0
      %p432 = por %p430, %p431
      %s433 = ssub.s32 %s41, %s48
      %p434 = scmp.eq.s32.totalorder %s433, 0
      %s436 = sadd.s32 %s435, 1
      %s437 = scalar_select %p434, %s435, %s436
      %p440 = pneg %p434
      %p441 = scmp.eq.s32.totalorder %s33, 3
      %p442 = por %p440, %p441
      %p443 = scmp.ne.s32.totalorder %s435, %s438
      %p444 = scmp.eq.s32.totalorder %s33, 0
      %p445 = por %p443, %p444
      %p446 = scmp.ne.s32.totalorder %s435, %s438
      %p447 = scmp.eq.s32.totalorder %s38, 3
      %p448 = por %p446, %p447
      %p449 = scmp.ne.s32.totalorder %s438, %s439
      %p450 = scmp.eq.s32.totalorder %s38, 0
      %p451 = por %p449, %p450
      %p452 = scmp.ne.s32.totalorder %s438, %s439
      %p453 = scmp.eq.s32.totalorder %s39, 3
      %p454 = por %p452, %p453
      %p456 = scmp.ne.s32.totalorder %s439, %s455
      %p457 = scmp.eq.s32.totalorder %s39, 0
      %p458 = por %p456, %p457
      %s460 = sadd.s32 %s459, 1
      %p463 = scmp.eq.s32.totalorder %s33, 3
      %p464 = scmp.ne.s32.totalorder %s459, %s461
      %p465 = scmp.eq.s32.totalorder %s33, 0
      %p466 = por %p464, %p465
      %p467 = scmp.ne.s32.totalorder %s459, %s461
      %p468 = scmp.eq.s32.totalorder %s38, 3
      %p469 = por %p467, %p468
      %p470 = scmp.ne.s32.totalorder %s461, %s462
      %p471 = scmp.eq.s32.totalorder %s38, 0
      %p472 = por %p470, %p471
      %p473 = scmp.ne.s32.totalorder %s461, %s462
      %p474 = scmp.eq.s32.totalorder %s39, 3
      %p475 = por %p473, %p474
      %p477 = scmp.ne.s32.totalorder %s462, %s476
      %p478 = scmp.eq.s32.totalorder %s39, 0
      %p479 = por %p477, %p478
      %s481 = sadd.s32 %s480, 1
      %p484 = scmp.eq.s32.totalorder %s33, 3
      %p485 = scmp.ne.s32.totalorder %s480, %s482
      %p486 = scmp.eq.s32.totalorder %s33, 0
      %p487 = por %p485, %p486
      %p488 = scmp.ne.s32.totalorder %s480, %s482
      %p489 = scmp.eq.s32.totalorder %s38, 3
      %p490 = por %p488, %p489
      %p491 = scmp.ne.s32.totalorder %s482, %s483
      %p492 = scmp.eq.s32.totalorder %s38, 0
      %p493 = por %p491, %p492
      %p494 = scmp.ne.s32.totalorder %s482, %s483
      %p495 = scmp.eq.s32.totalorder %s39, 3
      %p496 = por %p494, %p495
      %p498 = scmp.ne.s32.totalorder %s483, %s497
      %p499 = scmp.eq.s32.totalorder %s39, 0
      %p500 = por %p498, %p499
      %s502 = sadd.s32 %s501, 1
      %p505 = scmp.eq.s32.totalorder %s33, 3
      %p506 = scmp.ne.s32.totalorder %s501, %s503
      %p507 = scmp.eq.s32.totalorder %s33, 0
      %p508 = por %p506, %p507
      %p509 = scmp.ne.s32.totalorder %s501, %s503
      %p510 = scmp.eq.s32.totalorder %s38, 3
      %p511 = por %p509, %p510
      %p512 = scmp.ne.s32.totalorder %s503, %s504
      %p513 = scmp.eq.s32.totalorder %s38, 0
      %p514 = por %p512, %p513
      %p515 = scmp.ne.s32.totalorder %s503, %s504
      %p516 = scmp.eq.s32.totalorder %s39, 3
      %p517 = por %p515, %p516
      %p519 = scmp.ne.s32.totalorder %s504, %s518
      %p520 = scmp.eq.s32.totalorder %s39, 0
      %p521 = por %p519, %p520
      %s523 = sadd.s32 %s522, 1
      %p526 = scmp.eq.s32.totalorder %s33, 3
      %p527 = scmp.ne.s32.totalorder %s522, %s524
      %p528 = scmp.eq.s32.totalorder %s33, 0
      %p529 = por %p527, %p528
      %p530 = scmp.ne.s32.totalorder %s522, %s524
      %p531 = scmp.eq.s32.totalorder %s38, 3
      %p532 = por %p530, %p531
      %p533 = scmp.ne.s32.totalorder %s524, %s525
      %p534 = scmp.eq.s32.totalorder %s38, 0
      %p535 = por %p533, %p534
      %p536 = scmp.ne.s32.totalorder %s524, %s525
      %p537 = scmp.eq.s32.totalorder %s39, 3
      %p538 = por %p536, %p537
      %p540 = scmp.ne.s32.totalorder %s525, %s539
      %p541 = scmp.eq.s32.totalorder %s39, 0
      %p542 = por %p540, %p541
      %s543 = ssub.s32 %s40, %s52
      %p544 = scmp.eq.s32.totalorder %s543, 0
      %s546 = sadd.s32 %s545, 1
      %s547 = scalar_select %p544, %s545, %s546
      %p550 = pneg %p544
      %p551 = scmp.eq.s32.totalorder %s33, 3
      %p552 = por %p550, %p551
      %p553 = scmp.ne.s32.totalorder %s545, %s548
      %p554 = scmp.eq.s32.totalorder %s33, 0
      %p555 = por %p553, %p554
      %p556 = scmp.ne.s32.totalorder %s545, %s548
      %p557 = scmp.eq.s32.totalorder %s38, 3
      %p558 = por %p556, %p557
      %p559 = scmp.ne.s32.totalorder %s548, %s549
      %p560 = scmp.eq.s32.totalorder %s38, 0
      %p561 = por %p559, %p560
      %p562 = scmp.ne.s32.totalorder %s548, %s549
      %p563 = scmp.eq.s32.totalorder %s39, 3
      %p564 = por %p562, %p563
      %p566 = scmp.ne.s32.totalorder %s549, %s565
      %p567 = scmp.eq.s32.totalorder %s39, 0
      %p568 = por %p566, %p567
      %p569 = scmp.le.s32.totalorder 1, %s33
      %p570 = scmp.lt.s32.totalorder %s33, 5
      %p571 = pnand %p569, %p570
      %p572 = pneg %p571
      // Predicated region
      $region9: #{tpu_custom_call.1} parent=5 // pred_check
        _
      $region10: #{tpu_custom_call.1} parent=5 // pred_check_branch
        %574 = sbr.rel (%p571) target = $region12
      $region11: #{tpu_custom_call.1} parent=5 // pred_region
        %s575 = ssub.s32 %s33, 1
        // Predicated region
        $region13: #{tpu_custom_call.1} parent=11 // pred_check
          %p576 = pneg %p118
        $region14: #{tpu_custom_call.1} parent=11 // pred_check_branch
          %578 = sbr.rel (%p576) target = $region16
        $region15: #{tpu_custom_call.1} parent=11 // pred_region
          _
        $region16: #{tpu_custom_call.1} parent=11 // pred_fallthru
          _
        // Predicated region
        $region17: #{tpu_custom_call.1} parent=11 // pred_check
          %p579 = pneg %p139
        $region18: #{tpu_custom_call.1} parent=11 // pred_check_branch
          %581 = sbr.rel (%p579) target = $region20
        $region19: #{tpu_custom_call.1} parent=11 // pred_region
          %s583 = ssub.s32 16, 16
          %584 = vsyncadd [#allocation7], %s583
          %s586 = sshll.u32 [#allocation6], 4
          %s587 = int_to_ptr.vmem [resolvable:$true] %s586
          %589 = dma.hbm_to_vmem [thread:$0]  %s3, 16, %s587, [#allocation7]
        $region20: #{tpu_custom_call.1} parent=11 // pred_fallthru
          _
        // Predicated region
        $region21: #{tpu_custom_call.1} parent=11 // pred_check
          %p590 = pneg %p472
        $region22: #{tpu_custom_call.1} parent=11 // pred_check_branch
          %592 = sbr.rel (%p590) target = $region24
        $region23: #{tpu_custom_call.1} parent=11 // pred_region
          _
        $region24: #{tpu_custom_call.1} parent=11 // pred_fallthru
          _
        // Predicated region
        $region25: #{tpu_custom_call.1} parent=11 // pred_check
          %p593 = pneg %p493
        $region26: #{tpu_custom_call.1} parent=11 // pred_check_branch
          %595 = sbr.rel (%p593) target = $region28
        $region27: #{tpu_custom_call.1} parent=11 // pred_region
          _
        $region28: #{tpu_custom_call.1} parent=11 // pred_fallthru
          _
        // Predicated region
        $region29: #{tpu_custom_call.1} parent=11 // pred_check
          %p596 = pneg %p514
        $region30: #{tpu_custom_call.1} parent=11 // pred_check_branch
          %598 = sbr.rel (%p596) target = $region32
        $region31: #{tpu_custom_call.1} parent=11 // pred_region
          _
        $region32: #{tpu_custom_call.1} parent=11 // pred_fallthru
          _
        // Predicated region
        $region33: #{tpu_custom_call.1} parent=11 // pred_check
          %p599 = pneg %p535
        $region34: #{tpu_custom_call.1} parent=11 // pred_check_branch
          %601 = sbr.rel (%p599) target = $region36
        $region35: #{tpu_custom_call.1} parent=11 // pred_region
          _
        $region36: #{tpu_custom_call.1} parent=11 // pred_fallthru
          _
      $region12: #{tpu_custom_call.1} parent=5 // pred_fallthru
        _
      %p602 = scmp.lt.s32.totalorder %s33, 4
      // Predicated region
      $region37: #{tpu_custom_call.1} parent=5 // pred_check
        %p603 = pneg %p602
      $region38: #{tpu_custom_call.1} parent=5 // pred_check_branch
        %605 = sbr.rel (%p603) target = $region40
      $region39: #{tpu_custom_call.1} parent=5 // pred_region
        // Predicated region
        $region41: #{tpu_custom_call.1} parent=39 // pred_check
          %p606 = pneg %p65
        $region42: #{tpu_custom_call.1} parent=39 // pred_check_branch
          %608 = sbr.rel (%p606) target = $region44
        $region43: #{tpu_custom_call.1} parent=39 // pred_region
          %p609 = scmp.lt.s32.totalorder %s40, 1
          %s610 = scalar_select %p609, %s40, 1
          %s611 = smul.addr %s610, 8
          %s612 = scalar_lea.vmem %s0, %s611
        $region44: #{tpu_custom_call.1} parent=39 // pred_fallthru
          _
        // Predicated region
        $region45: #{tpu_custom_call.1} parent=39 // pred_check
          %p613 = pneg %p91
        $region46: #{tpu_custom_call.1} parent=39 // pred_check_branch
          %615 = sbr.rel (%p613) target = $region48
        $region47: #{tpu_custom_call.1} parent=39 // pred_region
          %s616 = sand.u32 %s33, 1
          %s617 = scalar_lea.sflag [#allocation4], %s616
          %s618 = sand.u32 %s81, 1
          %s619 = smul.addr %s618, 8
          %s620 = scalar_lea.vmem [#allocation3], %s619
          %s622 = ssub.s32 128, 128
          %623 = vsyncadd %s617, %s622
          %s624 = smul.addr %s40, 128
          %s625 = scalar_lea.hbm %s1, %s624
          %s627 = sshll.u32 %s620, 4
          %s628 = int_to_ptr.vmem [resolvable:$true] %s627
          %630 = dma.hbm_to_vmem [thread:$0]  %s625, 128, %s628, %s617
        $region48: #{tpu_custom_call.1} parent=39 // pred_fallthru
          _
        // Predicated region
        $region49: #{tpu_custom_call.1} parent=39 // pred_check
          %p631 = pneg %p159
        $region50: #{tpu_custom_call.1} parent=39 // pred_check_branch
          %633 = sbr.rel (%p631) target = $region52
        $region51: #{tpu_custom_call.1} parent=39 // pred_region
          %p634 = scmp.lt.s32.totalorder %s41, 1
          %s635 = scalar_select %p634, %s41, 1
          %s636 = smul.addr %s635, 4
          %s637 = smul.addr %s636, 4
          %s638 = scalar_lea.vmem %s4, %s637
        $region52: #{tpu_custom_call.1} parent=39 // pred_fallthru
          _
        // Predicated region
        $region53: #{tpu_custom_call.1} parent=39 // pred_check
          %p639 = pneg %p185
        $region54: #{tpu_custom_call.1} parent=39 // pred_check_branch
          %641 = sbr.rel (%p639) target = $region56
        $region55: #{tpu_custom_call.1} parent=39 // pred_region
          %p642 = scmp.lt.s32.totalorder %s41, 1
          %s643 = scalar_select %p642, %s41, 1
          %s644 = scalar_lea.vmem %s5, %s643
        $region56: #{tpu_custom_call.1} parent=39 // pred_fallthru
          _
        // Predicated region
        $region57: #{tpu_custom_call.1} parent=39 // pred_check
          %p645 = pneg %p211
        $region58: #{tpu_custom_call.1} parent=39 // pred_check_branch
          %647 = sbr.rel (%p645) target = $region60
        $region59: #{tpu_custom_call.1} parent=39 // pred_region
          %p648 = scmp.lt.s32.totalorder %s41, 1
          %s649 = scalar_select %p648, %s41, 1
          %s650 = smul.addr %s649, 4
          %s651 = smul.addr %s650, 4
          %s652 = scalar_lea.vmem %s6, %s651
        $region60: #{tpu_custom_call.1} parent=39 // pred_fallthru
          _
        // Predicated region
        $region61: #{tpu_custom_call.1} parent=39 // pred_check
          %p653 = pneg %p237
        $region62: #{tpu_custom_call.1} parent=39 // pred_check_branch
          %655 = sbr.rel (%p653) target = $region64
        $region63: #{tpu_custom_call.1} parent=39 // pred_region
          %s656 = sand.u32 %s33, 1
          %s657 = scalar_lea.sflag [#allocation4], %s656
          %s658 = sand.u32 %s227, 1
          %s659 = scalar_lea.vmem [#allocation8], %s658
          %s661 = ssub.s32 16, 16
          %662 = vsyncadd %s657, %s661
          %s663 = smul.addr %s41, 16
          %s664 = scalar_lea.hbm %s7, %s663
          %s666 = sshll.u32 %s659, 4
          %s667 = int_to_ptr.vmem [resolvable:$true] %s666
          %669 = dma.hbm_to_vmem [thread:$0]  %s664, 16, %s667, %s657
        $region64: #{tpu_custom_call.1} parent=39 // pred_fallthru
          _
        // Predicated region
        $region65: #{tpu_custom_call.1} parent=39 // pred_check
          %p670 = pneg %p263
        $region66: #{tpu_custom_call.1} parent=39 // pred_check_branch
          %672 = sbr.rel (%p670) target = $region68
        $region67: #{tpu_custom_call.1} parent=39 // pred_region
          %s673 = sand.u32 %s33, 1
          %s674 = scalar_lea.sflag [#allocation4], %s673
          %s675 = sand.u32 %s253, 1
          %s676 = scalar_lea.vmem [#allocation9], %s675
          %s678 = ssub.s32 16, 16
          %679 = vsyncadd %s674, %s678
          %s680 = smul.addr %s41, 16
          %s681 = scalar_lea.hbm %s8, %s680
          %s683 = sshll.u32 %s676, 4
          %s684 = int_to_ptr.vmem [resolvable:$true] %s683
          %686 = dma.hbm_to_vmem [thread:$0]  %s681, 16, %s684, %s674
        $region68: #{tpu_custom_call.1} parent=39 // pred_fallthru
          _
        // Predicated region
        $region69: #{tpu_custom_call.1} parent=39 // pred_check
          %p687 = pneg %p289
        $region70: #{tpu_custom_call.1} parent=39 // pred_check_branch
          %689 = sbr.rel (%p687) target = $region72
        $region71: #{tpu_custom_call.1} parent=39 // pred_region
          %s690 = sand.u32 %s33, 1
          %s691 = scalar_lea.sflag [#allocation4], %s690
          %s692 = sand.u32 %s279, 1
          %s693 = scalar_lea.vmem [#allocation10], %s692
          %s695 = ssub.s32 16, 16
          %696 = vsyncadd %s691, %s695
          %s697 = smul.addr %s41, 16
          %s698 = scalar_lea.hbm %s9, %s697
          %s700 = sshll.u32 %s693, 4
          %s701 = int_to_ptr.vmem [resolvable:$true] %s700
          %703 = dma.hbm_to_vmem [thread:$0]  %s698, 16, %s701, %s691
        $region72: #{tpu_custom_call.1} parent=39 // pred_fallthru
          _
        // Predicated region
        $region73: #{tpu_custom_call.1} parent=39 // pred_check
          %p704 = pneg %p315
        $region74: #{tpu_custom_call.1} parent=39 // pred_check_branch
          %706 = sbr.rel (%p704) target = $region76
        $region75: #{tpu_custom_call.1} parent=39 // pred_region
          %p707 = scmp.lt.s32.totalorder %s41, 1
          %s708 = scalar_select %p707, %s41, 1
          %s709 = smul.addr %s708, 4
          %s710 = smul.addr %s709, 4
          %s711 = scalar_lea.vmem %s10, %s710
        $region76: #{tpu_custom_call.1} parent=39 // pred_fallthru
          _
        // Predicated region
        $region77: #{tpu_custom_call.1} parent=39 // pred_check
          %p712 = pneg %p341
        $region78: #{tpu_custom_call.1} parent=39 // pred_check_branch
          %714 = sbr.rel (%p712) target = $region80
        $region79: #{tpu_custom_call.1} parent=39 // pred_region
          %s715 = sand.u32 %s33, 1
          %s716 = scalar_lea.sflag [#allocation4], %s715
          %s717 = sand.u32 %s331, 1
          %s718 = scalar_lea.vmem [#allocation11], %s717
          %s720 = ssub.s32 16, 16
          %721 = vsyncadd %s716, %s720
          %s722 = smul.addr %s41, 16
          %s723 = scalar_lea.hbm %s11, %s722
          %s725 = sshll.u32 %s718, 4
          %s726 = int_to_ptr.vmem [resolvable:$true] %s725
          %728 = dma.hbm_to_vmem [thread:$0]  %s723, 16, %s726, %s716
        $region80: #{tpu_custom_call.1} parent=39 // pred_fallthru
          _
        // Predicated region
        $region81: #{tpu_custom_call.1} parent=39 // pred_check
          %p729 = pneg %p367
        $region82: #{tpu_custom_call.1} parent=39 // pred_check_branch
          %731 = sbr.rel (%p729) target = $region84
        $region83: #{tpu_custom_call.1} parent=39 // pred_region
          %p732 = scmp.lt.s32.totalorder %s41, 1
          %s733 = scalar_select %p732, %s41, 1
          %s734 = smul.addr %s733, 8
          %s735 = smul.addr %s734, 4
          %s736 = scalar_lea.vmem %s12, %s735
        $region84: #{tpu_custom_call.1} parent=39 // pred_fallthru
          _
        // Predicated region
        $region85: #{tpu_custom_call.1} parent=39 // pred_check
          %p737 = pneg %p393
        $region86: #{tpu_custom_call.1} parent=39 // pred_check_branch
          %739 = sbr.rel (%p737) target = $region88
        $region87: #{tpu_custom_call.1} parent=39 // pred_region
          %s740 = sand.u32 %s33, 1
          %s741 = scalar_lea.sflag [#allocation4], %s740
          %s742 = sand.u32 %s383, 1
          %s743 = scalar_lea.vmem [#allocation12], %s742
          %s745 = ssub.s32 16, 16
          %746 = vsyncadd %s741, %s745
          %s747 = smul.addr %s41, 16
          %s748 = scalar_lea.hbm %s13, %s747
          %s750 = sshll.u32 %s743, 4
          %s751 = int_to_ptr.vmem [resolvable:$true] %s750
          %753 = dma.hbm_to_vmem [thread:$0]  %s748, 16, %s751, %s741
        $region88: #{tpu_custom_call.1} parent=39 // pred_fallthru
          _
        // Predicated region
        $region89: #{tpu_custom_call.1} parent=39 // pred_check
          %p754 = pneg %p419
        $region90: #{tpu_custom_call.1} parent=39 // pred_check_branch
          %756 = sbr.rel (%p754) target = $region92
        $region91: #{tpu_custom_call.1} parent=39 // pred_region
          %p757 = scmp.lt.s32.totalorder %s41, 1
          %s758 = scalar_select %p757, %s41, 1
          %s759 = scalar_lea.vmem %s14, %s758
        $region92: #{tpu_custom_call.1} parent=39 // pred_fallthru
          _
        // Predicated region
        $region93: #{tpu_custom_call.1} parent=39 // pred_check
          %p760 = pneg %p445
        $region94: #{tpu_custom_call.1} parent=39 // pred_check_branch
          %762 = sbr.rel (%p760) target = $region96
        $region95: #{tpu_custom_call.1} parent=39 // pred_region
          %p763 = scmp.lt.s32.totalorder %s41, 1
          %s764 = scalar_select %p763, %s41, 1
          %s765 = scalar_lea.vmem %s15, %s764
        $region96: #{tpu_custom_call.1} parent=39 // pred_fallthru
          _
      $region40: #{tpu_custom_call.1} parent=5 // pred_fallthru
        _
      %p766 = scmp.le.s32.totalorder 1, %s33
      %p767 = scmp.lt.s32.totalorder %s33, 5
      %p768 = pnand %p766, %p767
      %p769 = pneg %p768
      // Predicated region
      $region97: #{tpu_custom_call.1} parent=5 // pred_check
        _
      $region98: #{tpu_custom_call.1} parent=5 // pred_check_branch
        %771 = sbr.rel (%p768) target = $region100
      $region99: #{tpu_custom_call.1} parent=5 // pred_region
        %s772 = ssub.s32 %s33, 1
        %s773 = sand.u32 %s38, 1
        %s774 = scalar_lea.sflag [#allocation4], %s773
        %s775 = sand.u32 %s84, 1
        %s776 = smul.addr %s775, 8
        %s777 = scalar_lea.vmem [#allocation3], %s776
        // Predicated region
        $region101: #{tpu_custom_call.1} parent=99 // pred_check
          %p778 = pneg %p97
        $region102: #{tpu_custom_call.1} parent=99 // pred_check_branch
          %780 = sbr.rel (%p778) target = $region104
        $region103: #{tpu_custom_call.1} parent=99 // pred_region
          %781 = dma.done %s774, 128
        $region104: #{tpu_custom_call.1} parent=99 // pred_fallthru
          _
        // Predicated region
        $region105: #{tpu_custom_call.1} parent=99 // pred_check
          %p782 = pneg %p139
        $region106: #{tpu_custom_call.1} parent=99 // pred_check_branch
          %784 = sbr.rel (%p782) target = $region108
        $region107: #{tpu_custom_call.1} parent=99 // pred_region
          %785 = dma.done [#allocation7], 16
        $region108: #{tpu_custom_call.1} parent=99 // pred_fallthru
          _
        %s786 = sand.u32 %s38, 1
        %s787 = scalar_lea.sflag [#allocation4], %s786
        %s788 = sand.u32 %s230, 1
        %s789 = scalar_lea.vmem [#allocation8], %s788
        // Predicated region
        $region109: #{tpu_custom_call.1} parent=99 // pred_check
          %p790 = pneg %p243
        $region110: #{tpu_custom_call.1} parent=99 // pred_check_branch
          %792 = sbr.rel (%p790) target = $region112
        $region111: #{tpu_custom_call.1} parent=99 // pred_region
          %793 = dma.done %s787, 16
        $region112: #{tpu_custom_call.1} parent=99 // pred_fallthru
          _
        %s794 = sand.u32 %s38, 1
        %s795 = scalar_lea.sflag [#allocation4], %s794
        %s796 = sand.u32 %s256, 1
        %s797 = scalar_lea.vmem [#allocation9], %s796
        // Predicated region
        $region113: #{tpu_custom_call.1} parent=99 // pred_check
          %p798 = pneg %p269
        $region114: #{tpu_custom_call.1} parent=99 // pred_check_branch
          %800 = sbr.rel (%p798) target = $region116
        $region115: #{tpu_custom_call.1} parent=99 // pred_region
          %801 = dma.done %s795, 16
        $region116: #{tpu_custom_call.1} parent=99 // pred_fallthru
          _
        %s802 = sand.u32 %s38, 1
        %s803 = scalar_lea.sflag [#allocation4], %s802
        %s804 = sand.u32 %s282, 1
        %s805 = scalar_lea.vmem [#allocation10], %s804
        // Predicated region
        $region117: #{tpu_custom_call.1} parent=99 // pred_check
          %p806 = pneg %p295
        $region118: #{tpu_custom_call.1} parent=99 // pred_check_branch
          %808 = sbr.rel (%p806) target = $region120
        $region119: #{tpu_custom_call.1} parent=99 // pred_region
          %809 = dma.done %s803, 16
        $region120: #{tpu_custom_call.1} parent=99 // pred_fallthru
          _
        %s810 = sand.u32 %s38, 1
        %s811 = scalar_lea.sflag [#allocation4], %s810
        %s812 = sand.u32 %s334, 1
        %s813 = scalar_lea.vmem [#allocation11], %s812
        // Predicated region
        $region121: #{tpu_custom_call.1} parent=99 // pred_check
          %p814 = pneg %p347
        $region122: #{tpu_custom_call.1} parent=99 // pred_check_branch
          %816 = sbr.rel (%p814) target = $region124
        $region123: #{tpu_custom_call.1} parent=99 // pred_region
          %817 = dma.done %s811, 16
        $region124: #{tpu_custom_call.1} parent=99 // pred_fallthru
          _
        %s818 = sand.u32 %s38, 1
        %s819 = scalar_lea.sflag [#allocation4], %s818
        %s820 = sand.u32 %s386, 1
        %s821 = scalar_lea.vmem [#allocation12], %s820
        // Predicated region
        $region125: #{tpu_custom_call.1} parent=99 // pred_check
          %p822 = pneg %p399
        $region126: #{tpu_custom_call.1} parent=99 // pred_check_branch
          %824 = sbr.rel (%p822) target = $region128
        $region127: #{tpu_custom_call.1} parent=99 // pred_region
          %825 = dma.done %s819, 16
        $region128: #{tpu_custom_call.1} parent=99 // pred_fallthru
          _
        %p826 = scmp.lt.s32.totalorder %s42, 1
        %s827 = scalar_select %p826, %s42, 1
        %s828 = smul.addr %s827, 8
        %s829 = scalar_lea.vmem %s0, %s828
        %p830 = pneg %p71
        %p831 = pneg %p68
        %s832 = sand.u32 %s38, 1
        %s833 = scalar_lea.sflag [#allocation4], %s832
        %s834 = sand.u32 %s84, 1
        %s835 = smul.addr %s834, 8
        %s836 = scalar_lea.vmem [#allocation3], %s835
        %p837 = pneg %p97
        %p838 = pneg %p94
        %p839 = pneg %p118
        %p840 = pneg %p115
        %p841 = pneg %p139
        %p842 = pneg %p136
        %p843 = scmp.lt.s32.totalorder %s43, 1
        %s844 = scalar_select %p843, %s43, 1
        %s845 = smul.addr %s844, 4
        %s846 = smul.addr %s845, 4
        %s847 = scalar_lea.vmem %s4, %s846
        %p848 = pneg %p165
        %p849 = pneg %p162
        %p850 = scmp.lt.s32.totalorder %s43, 1
        %s851 = scalar_select %p850, %s43, 1
        %s852 = scalar_lea.vmem %s5, %s851
        %p853 = pneg %p191
        %p854 = pneg %p188
        %p855 = scmp.lt.s32.totalorder %s43, 1
        %s856 = scalar_select %p855, %s43, 1
        %s857 = smul.addr %s856, 4
        %s858 = smul.addr %s857, 4
        %s859 = scalar_lea.vmem %s6, %s858
        %p860 = pneg %p217
        %p861 = pneg %p214
        %s862 = sand.u32 %s38, 1
        %s863 = scalar_lea.sflag [#allocation4], %s862
        %s864 = sand.u32 %s230, 1
        %s865 = scalar_lea.vmem [#allocation8], %s864
        %p866 = pneg %p243
        %p867 = pneg %p240
        %s868 = sand.u32 %s38, 1
        %s869 = scalar_lea.sflag [#allocation4], %s868
        %s870 = sand.u32 %s256, 1
        %s871 = scalar_lea.vmem [#allocation9], %s870
        %p872 = pneg %p269
        %p873 = pneg %p266
        %s874 = sand.u32 %s38, 1
        %s875 = scalar_lea.sflag [#allocation4], %s874
        %s876 = sand.u32 %s282, 1
        %s877 = scalar_lea.vmem [#allocation10], %s876
        %p878 = pneg %p295
        %p879 = pneg %p292
        %p880 = scmp.lt.s32.totalorder %s43, 1
        %s881 = scalar_select %p880, %s43, 1
        %s882 = smul.addr %s881, 4
        %s883 = smul.addr %s882, 4
        %s884 = scalar_lea.vmem %s10, %s883
        %p885 = pneg %p321
        %p886 = pneg %p318
        %s887 = sand.u32 %s38, 1
        %s888 = scalar_lea.sflag [#allocation4], %s887
        %s889 = sand.u32 %s334, 1
        %s890 = scalar_lea.vmem [#allocation11], %s889
        %p891 = pneg %p347
        %p892 = pneg %p344
        %p893 = scmp.lt.s32.totalorder %s43, 1
        %s894 = scalar_select %p893, %s43, 1
        %s895 = smul.addr %s894, 8
        %s896 = smul.addr %s895, 4
        %s897 = scalar_lea.vmem %s12, %s896
        %p898 = pneg %p373
        %p899 = pneg %p370
        %s900 = sand.u32 %s38, 1
        %s901 = scalar_lea.sflag [#allocation4], %s900
        %s902 = sand.u32 %s386, 1
        %s903 = scalar_lea.vmem [#allocation12], %s902
        %p904 = pneg %p399
        %p905 = pneg %p396
        %p906 = scmp.lt.s32.totalorder %s43, 1
        %s907 = scalar_select %p906, %s43, 1
        %s908 = scalar_lea.vmem %s14, %s907
        %p909 = pneg %p425
        %p910 = pneg %p422
        %p911 = scmp.lt.s32.totalorder %s43, 1
        %s912 = scalar_select %p911, %s43, 1
        %s913 = scalar_lea.vmem %s15, %s912
        %p914 = pneg %p451
        %p915 = pneg %p448
        %p916 = pneg %p472
        %p917 = pneg %p469
        %p918 = pneg %p493
        %p919 = pneg %p490
        %p920 = pneg %p514
        %p921 = pneg %p511
        %p922 = pneg %p535
        %p923 = pneg %p532
        %p924 = pneg %p561
        %p925 = pneg %p558
        %s926 = sand.u32 %s548, 1
        %s927 = scalar_lea.sflag [#allocation5], %s926
        %s928 = sand.u32 %s548, 1
        %s929 = scalar_lea.vmem [#allocation13], %s928
        %p930 = scmp.lt.s32.totalorder %s42, 1
        %s931 = scalar_select %p930, %s42, 1
        %s932 = smul.addr %s931, 8
        %s933 = scalar_lea.vmem %s0, %s932
        %p934 = scmp.lt.s32.totalorder %s43, 1
        %s935 = scalar_select %p934, %s43, 1
        %s936 = smul.addr %s935, 4
        %s937 = smul.addr %s936, 4
        %s938 = scalar_lea.vmem %s4, %s937
        %p939 = scmp.lt.s32.totalorder %s43, 1
        %s940 = scalar_select %p939, %s43, 1
        %s941 = scalar_lea.vmem %s5, %s940
        %p942 = scmp.lt.s32.totalorder %s43, 1
        %s943 = scalar_select %p942, %s43, 1
        %s944 = smul.addr %s943, 4
        %s945 = smul.addr %s944, 4
        %s946 = scalar_lea.vmem %s6, %s945
        %p947 = scmp.lt.s32.totalorder %s43, 1
        %s948 = scalar_select %p947, %s43, 1
        %s949 = smul.addr %s948, 4
        %s950 = smul.addr %s949, 4
        %s951 = scalar_lea.vmem %s10, %s950
        %p952 = scmp.lt.s32.totalorder %s43, 1
        %s953 = scalar_select %p952, %s43, 1
        %s954 = smul.addr %s953, 8
        %s955 = smul.addr %s954, 4
        %s956 = scalar_lea.vmem %s12, %s955
        %p957 = scmp.lt.s32.totalorder %s43, 1
        %s958 = scalar_select %p957, %s43, 1
        %s959 = scalar_lea.vmem %s14, %s958
        %p960 = scmp.lt.s32.totalorder %s43, 1
        %s961 = scalar_select %p960, %s43, 1
        %s962 = scalar_lea.vmem %s15, %s961
        %p964 = scmp.eq.s32.totalorder %s43, 0
        // Predicated region
        $region129: #{tpu_custom_call.1} parent=99 // pred_check
          %p965 = pneg %p964
        $region130: #{tpu_custom_call.1} parent=99 // pred_check_branch
          %967 = sbr.rel (%p965) target = $region132
        $region131: #{tpu_custom_call.1} parent=99 // pred_region
          %v968 = vld [vmem:[%s933] sm:$0xff]
          %v969 = vld [vmem:[%s2] sm:$0x1]
          %v970 = vld [vmem:[#allocation6] sm:$0x1]
          %vm971 = vcmask 261120
          %v972 = vsel %vm971, %v968, 0.0
          %973 = vadd.xlane.f32.xlu0 %v972
          %v974 = vpop.xlane.xlu0 %973
          %v975 = vrcp.pop 32.0
          %v976 = vmul.f32 %v974, %v975
          %v977 = vsub.f32 %v968, %v976
          %v978 = vmul.f32 %v977, %v977
          %v979 = vsel %vm971, %v978, 0.0
          %980 = vadd.xlane.f32.xlu0 %v979
          %v981 = vpop.xlane.xlu0 %980
          %v982 = vmul.f32 %v981, %v975
          %v983 = vadd.f32 %v982, 1e-12
          %v984 = vrsqrt.pop %v983
          %v985 = vmul.f32 %v977, %v984
          %v987 = vlaneseq
          %v988 = vshrl.u32 %v987, 7
          %v989 = vsub.s32 0, %v988
          %v990 = vrot.slane %v969, %v989
          %v992 = vmul.f32 %v985, %v990
          %v994 = vlaneseq
          %v995 = vshrl.u32 %v994, 7
          %v996 = vsub.s32 0, %v995
          %v997 = vrot.slane %v970, %v996
          %v999 = vadd.f32 %v992, %v997
          %1000 = vst.msk [vmem:[#allocation2] sm:$0xff] %vm971, %v999
        $region132: #{tpu_custom_call.1} parent=99 // pred_fallthru
          _
        %v1001 = vld [vmem:[#allocation2] sm:$0xff]
        %v1002 = vpack.c.bf16 %v1001, %v1001
        %v1003 = vld [vmem:[%s938] sm:$0xf]
        %v1004 = vld [vmem:[%s938 + $0x4] sm:$0xf]
        %v1005 = vld [vmem:[%s938 + $0x8] sm:$0xf]
        %v1006 = vld [vmem:[%s938 + $0xc] sm:$0xf]
        %v1007 = vld [vmem:[%s941] sm:$0x1]
        %v1009 = vlaneseq
        %v1010 = vshrl.u32 %v1009, 7
        %v1011 = vsub.s32 0, %v1010
        %v1012 = vrot.slane %v1007, %v1011
        %v1018 = vunpack.c.l.b16 %v1003
        %v1019 = vunpack.c.l.b16 %v1004
        %v1020 = vunpack.c.l.b16 %v1005
        %v1021 = vunpack.c.l.b16 %v1006
        %v1022 = vpack.c.b16 %v1019, %v1018
        %v1023 = vpack.c.b16 %v1021, %v1020
        %vm1026 = vcmask 261120
        %v1028 = vsel %vm1026, %v1002, 0
        %1030 = vmatprep.subr.bf16.mxu0 0
        %1031 = vmatpush1.bf16.msra.mxu0 %v1022
        %1032 = vmatprep.subr.bf16.mxu0 0
        %1033 = vmatpush1.bf16.msra.mxu0 %v1023
        %1034 = vmatprep.subr.bf16.mxu0 0
        %1035 = vmatpush1.bf16.msra.mxu0 0
        %1036 = vmatprep.subr.bf16.mxu0 0
        %1037 = vmatpush1.bf16.msra.mxu0 0
        %1038 = vmatprep.subr.bf16.mxu0 0
        %1039 = vmatpush1.bf16.msra.mxu0 0
        %1040 = vmatprep.subr.bf16.mxu0 0
        %1041 = vmatpush1.bf16.msra.mxu0 0
        %1042 = vmatprep.subr.bf16.mxu0 0
        %1043 = vmatpush1.bf16.msra.mxu0 0
        %1044 = vmatprep.subr.bf16.mxu0 0
        %1045 = vmatpush1.bf16.msra.mxu0 0
        %1046 = vmatprep.subr.bf16.mxu0 0
        %1047 = vmatpush1.bf16.msra.mxu0 0
        %1048 = vmatprep.subr.bf16.mxu0 0
        %1049 = vmatpush1.bf16.msra.mxu0 0
        %1050 = vmatprep.subr.bf16.mxu0 0
        %1051 = vmatpush1.bf16.msra.mxu0 0
        %1052 = vmatprep.subr.bf16.mxu0 0
        %1053 = vmatpush1.bf16.msra.mxu0 0
        %1054 = vmatprep.subr.bf16.mxu0 0
        %1055 = vmatpush1.bf16.msra.mxu0 0
        %1056 = vmatprep.subr.bf16.mxu0 0
        %1057 = vmatpush1.bf16.msra.mxu0 0
        %1058 = vmatprep.subr.bf16.mxu0 0
        %1059 = vmatpush1.bf16.msra.mxu0 0
        %1060 = vmatprep.subr.bf16.mxu0 0
        %1061 = vmatpush1.bf16.msra.mxu0 0
        %1062 = vmatprep.mubr.bf16.mxu0 0
        %1063 = vmatmul.mubr.bf16.gmra.mrb[0].mxu0 %v1028
        %v1064 = vpop.f32.mrb[0].mxu0
        %v1065 = vadd.f32 %v1012, %v1064
        %v1066 = vpop.f32.mrb[0].mxu0
        %v1067 = vpop.f32.mrb[0].mxu0
        %v1068 = vpop.f32.mrb[0].mxu0
        %1069 = vdwg.mxu0
        %v1070 = vmul.f32 %v1065, 0.25
        %v1071 = vld [vmem:[%s777] sm:$0xff]
        %v1072 = vpack.c.bf16 %v1070, %v1070
        %v1073 = vpack.c.bf16 %v1065, %v1065
        %1075 = vrot.lane.b32.xlu0 %v1073, 96
        %v1076 = vpop.permute.xlu0 %1075
        %vm1077 = vcmask 130048
        %v1079 = vsel %vm1077, %v1072, 0
        %v1082 = vsel %vm1077, %v1076, 0
        %1084 = vmatprep.subr.bf16.mxu0 0
        %1085 = vmatpush1.bf16.xpose.msra.mxu0 %v1082
        %1086 = vmatprep.subr.bf16.mxu0 0
        %1087 = vmatpush1.bf16.xpose.msra.mxu0 0
        %1088 = vmatprep.subr.bf16.mxu0 0
        %1089 = vmatpush1.bf16.xpose.msra.mxu0 0
        %1090 = vmatprep.subr.bf16.mxu0 0
        %1091 = vmatpush1.bf16.xpose.msra.mxu0 0
        %1092 = vmatprep.subr.bf16.mxu0 0
        %1093 = vmatpush1.bf16.xpose.msra.mxu0 0
        %1094 = vmatprep.subr.bf16.mxu0 0
        %1095 = vmatpush1.bf16.xpose.msra.mxu0 0
        %1096 = vmatprep.subr.bf16.mxu0 0
        %1097 = vmatpush1.bf16.xpose.msra.mxu0 0
        %1098 = vmatprep.subr.bf16.mxu0 0
        %1099 = vmatpush1.bf16.xpose.msra.mxu0 0
        %1100 = vmatprep.subr.bf16.mxu0 0
        %1101 = vmatpush1.bf16.xpose.msra.mxu0 0
        %1102 = vmatprep.subr.bf16.mxu0 0
        %1103 = vmatpush1.bf16.xpose.msra.mxu0 0
        %1104 = vmatprep.subr.bf16.mxu0 0
        %1105 = vmatpush1.bf16.xpose.msra.mxu0 0
        %1106 = vmatprep.subr.bf16.mxu0 0
        %1107 = vmatpush1.bf16.xpose.msra.mxu0 0
        %1108 = vmatprep.subr.bf16.mxu0 0
        %1109 = vmatpush1.bf16.xpose.msra.mxu0 0
        %1110 = vmatprep.subr.bf16.mxu0 0
        %1111 = vmatpush1.bf16.xpose.msra.mxu0 0
        %1112 = vmatprep.subr.bf16.mxu0 0
        %1113 = vmatpush1.bf16.xpose.msra.mxu0 0
        %1114 = vmatprep.subr.bf16.mxu0 0
        %1115 = vmatpush1.bf16.xpose.msra.mxu0 0
        %1116 = vmatprep.mubr.bf16.mxu0 0
        %1117 = vmatmul.mubr.bf16.gmra.mrb[0].mxu0 %v1079
        %v1118 = vpop.f32.mrb[0].mxu0
        %v1119 = vadd.f32 %v1071, %v1118
        %v1120 = vpop.f32.mrb[0].mxu0
        %v1121 = vpop.f32.mrb[0].mxu0
        %v1122 = vpop.f32.mrb[0].mxu0
        %1123 = vdwg.mxu0
        %vm1124 = vcmask 64512
        %v1125 = vsel %vm1124, %v1119, -inf
        %1126 = vmax.xlane.f32.xlu0 %v1125
        %v1127 = vpop.xlane.xlu0 %1126
        %v1128 = vsub.f32 %v1119, %v1127
        %v1129 = vmul.f32 %v1128, 1.442695
        %v1130 = vpow.pop %v1129
        %v1131 = vsel %vm1124, %v1130, 0.0
        %1132 = vadd.xlane.f32.xlu0 %v1131
        %v1133 = vpop.xlane.xlu0 %1132
        %v1134 = vrcp.pop %v1133
        %v1135 = vmul.f32 %v1130, %v1134
        %v1136 = vpack.c.bf16 %v1135, %v1135
        %1137 = vrot.lane.b32.xlu0 %v1073, 64
        %v1138 = vpop.permute.xlu0 %1137
        %v1140 = vsel %vm1124, %v1136, 0
        %vm1142 = vcmask 1043456
        %v1144 = vsel %vm1142, %v1138, 0
        %1146 = vmatprep.subr.bf16.mxu0 0
        %1147 = vmatpush1.bf16.msra.mxu0 %v1144
        %1148 = vmatprep.subr.bf16.mxu0 0
        %1149 = vmatpush1.bf16.msra.mxu0 0
        %1150 = vmatprep.subr.bf16.mxu0 0
        %1151 = vmatpush1.bf16.msra.mxu0 0
        %1152 = vmatprep.subr.bf16.mxu0 0
        %1153 = vmatpush1.bf16.msra.mxu0 0
        %1154 = vmatprep.subr.bf16.mxu0 0
        %1155 = vmatpush1.bf16.msra.mxu0 0
        %1156 = vmatprep.subr.bf16.mxu0 0
        %1157 = vmatpush1.bf16.msra.mxu0 0
        %1158 = vmatprep.subr.bf16.mxu0 0
        %1159 = vmatpush1.bf16.msra.mxu0 0
        %1160 = vmatprep.subr.bf16.mxu0 0
        %1161 = vmatpush1.bf16.msra.mxu0 0
        %1162 = vmatprep.subr.bf16.mxu0 0
        %1163 = vmatpush1.bf16.msra.mxu0 0
        %1164 = vmatprep.subr.bf16.mxu0 0
        %1165 = vmatpush1.bf16.msra.mxu0 0
        %1166 = vmatprep.subr.bf16.mxu0 0
        %1167 = vmatpush1.bf16.msra.mxu0 0
        %1168 = vmatprep.subr.bf16.mxu0 0
        %1169 = vmatpush1.bf16.msra.mxu0 0
        %1170 = vmatprep.subr.bf16.mxu0 0
        %1171 = vmatpush1.bf16.msra.mxu0 0
        %1172 = vmatprep.subr.bf16.mxu0 0
        %1173 = vmatpush1.bf16.msra.mxu0 0
        %1174 = vmatprep.subr.bf16.mxu0 0
        %1175 = vmatpush1.bf16.msra.mxu0 0
        %1176 = vmatprep.subr.bf16.mxu0 0
        %1177 = vmatpush1.bf16.msra.mxu0 0
        %1178 = vmatprep.mubr.bf16.mxu0 0
        %1179 = vmatmul.mubr.bf16.gmra.mrb[0].mxu0 %v1140
        %v1180 = vpop.f32.mrb[0].mxu0
        %v1181 = vadd.f32 0.0, %v1180
        %v1182 = vpop.f32.mrb[0].mxu0
        %v1183 = vpop.f32.mrb[0].mxu0
        %v1184 = vpop.f32.mrb[0].mxu0
        %1185 = vdwg.mxu0
        %1187 = vrot.lane.b32.xlu0 %v1072, 112
        %v1188 = vpop.permute.xlu0 %1187
        %1189 = vrot.lane.b32.xlu0 %v1073, 80
        %v1190 = vpop.permute.xlu0 %1189
        %v1192 = vsel %vm1077, %v1188, 0
        %v1195 = vsel %vm1077, %v1190, 0
        %1197 = vmatprep.subr.bf16.mxu0 0
        %1198 = vmatpush1.bf16.xpose.msra.mxu0 %v1195
        %1199 = vmatprep.subr.bf16.mxu0 0
        %1200 = vmatpush1.bf16.xpose.msra.mxu0 0
        %1201 = vmatprep.subr.bf16.mxu0 0
        %1202 = vmatpush1.bf16.xpose.msra.mxu0 0
        %1203 = vmatprep.subr.bf16.mxu0 0
        %1204 = vmatpush1.bf16.xpose.msra.mxu0 0
        %1205 = vmatprep.subr.bf16.mxu0 0
        %1206 = vmatpush1.bf16.xpose.msra.mxu0 0
        %1207 = vmatprep.subr.bf16.mxu0 0
        %1208 = vmatpush1.bf16.xpose.msra.mxu0 0
        %1209 = vmatprep.subr.bf16.mxu0 0
        %1210 = vmatpush1.bf16.xpose.msra.mxu0 0
        %1211 = vmatprep.subr.bf16.mxu0 0
        %1212 = vmatpush1.bf16.xpose.msra.mxu0 0
        %1213 = vmatprep.subr.bf16.mxu0 0
        %1214 = vmatpush1.bf16.xpose.msra.mxu0 0
        %1215 = vmatprep.subr.bf16.mxu0 0
        %1216 = vmatpush1.bf16.xpose.msra.mxu0 0
        %1217 = vmatprep.subr.bf16.mxu0 0
        %1218 = vmatpush1.bf16.xpose.msra.mxu0 0
        %1219 = vmatprep.subr.bf16.mxu0 0
        %1220 = vmatpush1.bf16.xpose.msra.mxu0 0
        %1221 = vmatprep.subr.bf16.mxu0 0
        %1222 = vmatpush1.bf16.xpose.msra.mxu0 0
        %1223 = vmatprep.subr.bf16.mxu0 0
        %1224 = vmatpush1.bf16.xpose.msra.mxu0 0
        %1225 = vmatprep.subr.bf16.mxu0 0
        %1226 = vmatpush1.bf16.xpose.msra.mxu0 0
        %1227 = vmatprep.subr.bf16.mxu0 0
        %1228 = vmatpush1.bf16.xpose.msra.mxu0 0
        %1229 = vmatprep.mubr.bf16.mxu0 0
        %1230 = vmatmul.mubr.bf16.gmra.mrb[0].mxu0 %v1192
        %v1231 = vpop.f32.mrb[0].mxu0
        %v1232 = vadd.f32 %v1071, %v1231
        %v1233 = vpop.f32.mrb[0].mxu0
        %v1234 = vpop.f32.mrb[0].mxu0
        %v1235 = vpop.f32.mrb[0].mxu0
        %1236 = vdwg.mxu0
        %v1237 = vsel %vm1124, %v1232, -inf
        %1238 = vmax.xlane.f32.xlu0 %v1237
        %v1239 = vpop.xlane.xlu0 %1238
        %v1240 = vsub.f32 %v1232, %v1239
        %v1241 = vmul.f32 %v1240, 1.442695
        %v1242 = vpow.pop %v1241
        %v1243 = vsel %vm1124, %v1242, 0.0
        %1244 = vadd.xlane.f32.xlu0 %v1243
        %v1245 = vpop.xlane.xlu0 %1244
        %v1246 = vrcp.pop %v1245
        %v1247 = vmul.f32 %v1242, %v1246
        %v1248 = vpack.c.bf16 %v1247, %v1247
        %1249 = vrot.lane.b32.xlu0 %v1073, 48
        %v1250 = vpop.permute.xlu0 %1249
        %v1252 = vsel %vm1124, %v1248, 0
        %v1255 = vsel %vm1142, %v1250, 0
        %1257 = vmatprep.subr.bf16.mxu0 0
        %1258 = vmatpush1.bf16.msra.mxu0 %v1255
        %1259 = vmatprep.subr.bf16.mxu0 0
        %1260 = vmatpush1.bf16.msra.mxu0 0
        %1261 = vmatprep.subr.bf16.mxu0 0
        %1262 = vmatpush1.bf16.msra.mxu0 0
        %1263 = vmatprep.subr.bf16.mxu0 0
        %1264 = vmatpush1.bf16.msra.mxu0 0
        %1265 = vmatprep.subr.bf16.mxu0 0
        %1266 = vmatpush1.bf16.msra.mxu0 0
        %1267 = vmatprep.subr.bf16.mxu0 0
        %1268 = vmatpush1.bf16.msra.mxu0 0
        %1269 = vmatprep.subr.bf16.mxu0 0
        %1270 = vmatpush1.bf16.msra.mxu0 0
        %1271 = vmatprep.subr.bf16.mxu0 0
        %1272 = vmatpush1.bf16.msra.mxu0 0
        %1273 = vmatprep.subr.bf16.mxu0 0
        %1274 = vmatpush1.bf16.msra.mxu0 0
        %1275 = vmatprep.subr.bf16.mxu0 0
        %1276 = vmatpush1.bf16.msra.mxu0 0
        %1277 = vmatprep.subr.bf16.mxu0 0
        %1278 = vmatpush1.bf16.msra.mxu0 0
        %1279 = vmatprep.subr.bf16.mxu0 0
        %1280 = vmatpush1.bf16.msra.mxu0 0
        %1281 = vmatprep.subr.bf16.mxu0 0
        %1282 = vmatpush1.bf16.msra.mxu0 0
        %1283 = vmatprep.subr.bf16.mxu0 0
        %1284 = vmatpush1.bf16.msra.mxu0 0
        %1285 = vmatprep.subr.bf16.mxu0 0
        %1286 = vmatpush1.bf16.msra.mxu0 0
        %1287 = vmatprep.subr.bf16.mxu0 0
        %1288 = vmatpush1.bf16.msra.mxu0 0
        %1289 = vmatprep.mubr.bf16.mxu0 0
        %1290 = vmatmul.mubr.bf16.gmra.mrb[0].mxu0 %v1252
        %v1291 = vpop.f32.mrb[0].mxu0
        %v1292 = vadd.f32 0.0, %v1291
        %v1293 = vpop.f32.mrb[0].mxu0
        %v1294 = vpop.f32.mrb[0].mxu0
        %v1295 = vpop.f32.mrb[0].mxu0
        %1296 = vdwg.mxu0
        %1298 = vrot.lane.b32.xlu0 %v1292, 16
        %v1299 = vpop.permute.xlu0 %1298
        %v1301 = vsel %vm1077, %v1181, %v1299
        %v1302 = vpack.c.bf16 %v1301, %v1301
        %v1303 = vld [vmem:[%s946] sm:$0xf]
        %v1304 = vld [vmem:[%s946 + $0x4] sm:$0xf]
        %v1305 = vld [vmem:[%s946 + $0x8] sm:$0xf]
        %v1306 = vld [vmem:[%s946 + $0xc] sm:$0xf]
        %v1307 = vld [vmem:[%s789] sm:$0x1]
        %v1309 = vlaneseq
        %v1310 = vshrl.u32 %v1309, 7
        %v1311 = vsub.s32 0, %v1310
        %v1312 = vrot.slane %v1307, %v1311
        %v1318 = vunpack.c.l.b16 %v1303
        %v1319 = vunpack.c.l.b16 %v1304
        %v1320 = vunpack.c.l.b16 %v1305
        %v1321 = vunpack.c.l.b16 %v1306
        %v1322 = vpack.c.b16 %v1319, %v1318
        %v1323 = vpack.c.b16 %v1321, %v1320
        %v1327 = vsel %vm1026, %v1302, 0
        %1329 = vmatprep.subr.bf16.mxu0 0
        %1330 = vmatpush1.bf16.msra.mxu0 %v1322
        %1331 = vmatprep.subr.bf16.mxu0 0
        %1332 = vmatpush1.bf16.msra.mxu0 %v1323
        %1333 = vmatprep.subr.bf16.mxu0 0
        %1334 = vmatpush1.bf16.msra.mxu0 0
        %1335 = vmatprep.subr.bf16.mxu0 0
        %1336 = vmatpush1.bf16.msra.mxu0 0
        %1337 = vmatprep.subr.bf16.mxu0 0
        %1338 = vmatpush1.bf16.msra.mxu0 0
        %1339 = vmatprep.subr.bf16.mxu0 0
        %1340 = vmatpush1.bf16.msra.mxu0 0
        %1341 = vmatprep.subr.bf16.mxu0 0
        %1342 = vmatpush1.bf16.msra.mxu0 0
        %1343 = vmatprep.subr.bf16.mxu0 0
        %1344 = vmatpush1.bf16.msra.mxu0 0
        %1345 = vmatprep.subr.bf16.mxu0 0
        %1346 = vmatpush1.bf16.msra.mxu0 0
        %1347 = vmatprep.subr.bf16.mxu0 0
        %1348 = vmatpush1.bf16.msra.mxu0 0
        %1349 = vmatprep.subr.bf16.mxu0 0
        %1350 = vmatpush1.bf16.msra.mxu0 0
        %1351 = vmatprep.subr.bf16.mxu0 0
        %1352 = vmatpush1.bf16.msra.mxu0 0
        %1353 = vmatprep.subr.bf16.mxu0 0
        %1354 = vmatpush1.bf16.msra.mxu0 0
        %1355 = vmatprep.subr.bf16.mxu0 0
        %1356 = vmatpush1.bf16.msra.mxu0 0
        %1357 = vmatprep.subr.bf16.mxu0 0
        %1358 = vmatpush1.bf16.msra.mxu0 0
        %1359 = vmatprep.subr.bf16.mxu0 0
        %1360 = vmatpush1.bf16.msra.mxu0 0
        %1361 = vmatprep.mubr.bf16.mxu0 0
        %1362 = vmatmul.mubr.bf16.gmra.mrb[0].mxu0 %v1327
        %v1363 = vpop.f32.mrb[0].mxu0
        %v1364 = vadd.f32 %v1312, %v1363
        %v1365 = vpop.f32.mrb[0].mxu0
        %v1366 = vpop.f32.mrb[0].mxu0
        %v1367 = vpop.f32.mrb[0].mxu0
        %1368 = vdwg.mxu0
        %v1369 = vadd.f32 %v1001, %v1364
        %v1370 = vld [vmem:[%s797] sm:$0x1]
        %v1371 = vld [vmem:[%s805] sm:$0x1]
        %v1372 = vsel %vm1026, %v1369, 0.0
        %1373 = vadd.xlane.f32.xlu0 %v1372
        %v1374 = vpop.xlane.xlu0 %1373
        %v1375 = vrcp.pop 32.0
        %v1376 = vmul.f32 %v1374, %v1375
        %v1377 = vsub.f32 %v1369, %v1376
        %v1378 = vmul.f32 %v1377, %v1377
        %v1379 = vsel %vm1026, %v1378, 0.0
        %1380 = vadd.xlane.f32.xlu0 %v1379
        %v1381 = vpop.xlane.xlu0 %1380
        %v1382 = vmul.f32 %v1381, %v1375
        %v1383 = vadd.f32 %v1382, 1e-12
        %v1384 = vrsqrt.pop %v1383
        %v1385 = vmul.f32 %v1377, %v1384
        %v1387 = vlaneseq
        %v1388 = vshrl.u32 %v1387, 7
        %v1389 = vsub.s32 0, %v1388
        %v1390 = vrot.slane %v1370, %v1389
        %v1392 = vmul.f32 %v1385, %v1390
        %v1394 = vlaneseq
        %v1395 = vshrl.u32 %v1394, 7
        %v1396 = vsub.s32 0, %v1395
        %v1397 = vrot.slane %v1371, %v1396
        %v1399 = vadd.f32 %v1392, %v1397
        %v1400 = vpack.c.bf16 %v1399, %v1399
        %v1401 = vld [vmem:[%s951] sm:$0xf]
        %v1402 = vld [vmem:[%s951 + $0x4] sm:$0xf]
        %v1403 = vld [vmem:[%s951 + $0x8] sm:$0xf]
        %v1404 = vld [vmem:[%s951 + $0xc] sm:$0xf]
        %v1405 = vld [vmem:[%s813] sm:$0x1]
        %v1407 = vlaneseq
        %v1408 = vshrl.u32 %v1407, 7
        %v1409 = vsub.s32 0, %v1408
        %v1410 = vrot.slane %v1405, %v1409
        %v1416 = vunpack.c.l.b16 %v1401
        %v1417 = vunpack.c.l.b16 %v1402
        %v1418 = vunpack.c.l.b16 %v1403
        %v1419 = vunpack.c.l.b16 %v1404
        %v1420 = vpack.c.b16 %v1417, %v1416
        %v1421 = vpack.c.b16 %v1419, %v1418
        %v1425 = vsel %vm1026, %v1400, 0
        %1427 = vmatprep.subr.bf16.mxu0 0
        %1428 = vmatpush1.bf16.msra.mxu0 %v1420
        %1429 = vmatprep.subr.bf16.mxu0 0
        %1430 = vmatpush1.bf16.msra.mxu0 %v1421
        %1431 = vmatprep.subr.bf16.mxu0 0
        %1432 = vmatpush1.bf16.msra.mxu0 0
        %1433 = vmatprep.subr.bf16.mxu0 0
        %1434 = vmatpush1.bf16.msra.mxu0 0
        %1435 = vmatprep.subr.bf16.mxu0 0
        %1436 = vmatpush1.bf16.msra.mxu0 0
        %1437 = vmatprep.subr.bf16.mxu0 0
        %1438 = vmatpush1.bf16.msra.mxu0 0
        %1439 = vmatprep.subr.bf16.mxu0 0
        %1440 = vmatpush1.bf16.msra.mxu0 0
        %1441 = vmatprep.subr.bf16.mxu0 0
        %1442 = vmatpush1.bf16.msra.mxu0 0
        %1443 = vmatprep.subr.bf16.mxu0 0
        %1444 = vmatpush1.bf16.msra.mxu0 0
        %1445 = vmatprep.subr.bf16.mxu0 0
        %1446 = vmatpush1.bf16.msra.mxu0 0
        %1447 = vmatprep.subr.bf16.mxu0 0
        %1448 = vmatpush1.bf16.msra.mxu0 0
        %1449 = vmatprep.subr.bf16.mxu0 0
        %1450 = vmatpush1.bf16.msra.mxu0 0
        %1451 = vmatprep.subr.bf16.mxu0 0
        %1452 = vmatpush1.bf16.msra.mxu0 0
        %1453 = vmatprep.subr.bf16.mxu0 0
        %1454 = vmatpush1.bf16.msra.mxu0 0
        %1455 = vmatprep.subr.bf16.mxu0 0
        %1456 = vmatpush1.bf16.msra.mxu0 0
        %1457 = vmatprep.subr.bf16.mxu0 0
        %1458 = vmatpush1.bf16.msra.mxu0 0
        %1459 = vmatprep.mubr.bf16.mxu0 0
        %1460 = vmatmul.mubr.bf16.gmra.mrb[0].mxu0 %v1425
        %v1461 = vpop.f32.mrb[0].mxu0
        %v1462 = vadd.f32 %v1410, %v1461
        %v1463 = vpop.f32.mrb[0].mxu0
        %v1464 = vpop.f32.mrb[0].mxu0
        %v1465 = vpop.f32.mrb[0].mxu0
        %1466 = vdwg.mxu0
        %v1467 = vmul.f32 %v1462, 0.5
        %v1468 = vmul.f32 %v1462, 0.044715
        %v1469 = vmul.f32 %v1468, %v1462
        %v1470 = vmul.f32 %v1469, %v1462
        %v1471 = vadd.f32 %v1462, %v1470
        %v1472 = vmul.f32 %v1471, 0.7978846
        %v1473 = vtanh.pop %v1472
        %v1474 = vadd.f32 %v1473, 1.0
        %v1475 = vmul.f32 %v1467, %v1474
        %v1476 = vpack.c.bf16 %v1475, %v1475
        %v1477 = vld [vmem:[%s956] sm:$0xf]
        %v1478 = vld [vmem:[%s956 + $0x4] sm:$0xf]
        %v1479 = vld [vmem:[%s956 + $0x8] sm:$0xf]
        %v1480 = vld [vmem:[%s956 + $0xc] sm:$0xf]
        %v1481 = vld [vmem:[%s956 + $0x10] sm:$0xf]
        %v1482 = vld [vmem:[%s956 + $0x14] sm:$0xf]
        %v1483 = vld [vmem:[%s956 + $0x18] sm:$0xf]
        %v1484 = vld [vmem:[%s956 + $0x1c] sm:$0xf]
        %v1485 = vld [vmem:[%s821] sm:$0x1]
        %v1487 = vlaneseq
        %v1488 = vshrl.u32 %v1487, 7
        %v1489 = vsub.s32 0, %v1488
        %v1490 = vrot.slane %v1485, %v1489
        %v1500 = vunpack.c.l.b16 %v1477
        %v1501 = vunpack.c.l.b16 %v1478
        %v1502 = vunpack.c.l.b16 %v1479
        %v1503 = vunpack.c.l.b16 %v1480
        %v1504 = vunpack.c.l.b16 %v1481
        %v1505 = vunpack.c.l.b16 %v1482
        %v1506 = vunpack.c.l.b16 %v1483
        %v1507 = vunpack.c.l.b16 %v1484
        %v1508 = vpack.c.b16 %v1501, %v1500
        %v1509 = vpack.c.b16 %v1503, %v1502
        %v1510 = vpack.c.b16 %v1505, %v1504
        %v1511 = vpack.c.b16 %v1507, %v1506
        %vm1516 = vcmask 523264
        %v1518 = vsel %vm1516, %v1476, 0
        %1520 = vmatprep.subr.bf16.mxu0 0
        %1521 = vmatpush1.bf16.msra.mxu0 %v1508
        %1522 = vmatprep.subr.bf16.mxu0 0
        %1523 = vmatpush1.bf16.msra.mxu0 %v1509
        %1524 = vmatprep.subr.bf16.mxu0 0
        %1525 = vmatpush1.bf16.msra.mxu0 %v1510
        %1526 = vmatprep.subr.bf16.mxu0 0
        %1527 = vmatpush1.bf16.msra.mxu0 %v1511
        %1528 = vmatprep.subr.bf16.mxu0 0
        %1529 = vmatpush1.bf16.msra.mxu0 0
        %1530 = vmatprep.subr.bf16.mxu0 0
        %1531 = vmatpush1.bf16.msra.mxu0 0
        %1532 = vmatprep.subr.bf16.mxu0 0
        %1533 = vmatpush1.bf16.msra.mxu0 0
        %1534 = vmatprep.subr.bf16.mxu0 0
        %1535 = vmatpush1.bf16.msra.mxu0 0
        %1536 = vmatprep.subr.bf16.mxu0 0
        %1537 = vmatpush1.bf16.msra.mxu0 0
        %1538 = vmatprep.subr.bf16.mxu0 0
        %1539 = vmatpush1.bf16.msra.mxu0 0
        %1540 = vmatprep.subr.bf16.mxu0 0
        %1541 = vmatpush1.bf16.msra.mxu0 0
        %1542 = vmatprep.subr.bf16.mxu0 0
        %1543 = vmatpush1.bf16.msra.mxu0 0
        %1544 = vmatprep.subr.bf16.mxu0 0
        %1545 = vmatpush1.bf16.msra.mxu0 0
        %1546 = vmatprep.subr.bf16.mxu0 0
        %1547 = vmatpush1.bf16.msra.mxu0 0
        %1548 = vmatprep.subr.bf16.mxu0 0
        %1549 = vmatpush1.bf16.msra.mxu0 0
        %1550 = vmatprep.subr.bf16.mxu0 0
        %1551 = vmatpush1.bf16.msra.mxu0 0
        %1552 = vmatprep.mubr.bf16.mxu0 0
        %1553 = vmatmul.mubr.bf16.gmra.mrb[0].mxu0 %v1518
        %v1554 = vpop.f32.mrb[0].mxu0
        %v1555 = vadd.f32 %v1490, %v1554
        %v1556 = vpop.f32.mrb[0].mxu0
        %v1557 = vpop.f32.mrb[0].mxu0
        %v1558 = vpop.f32.mrb[0].mxu0
        %1559 = vdwg.mxu0
        %v1560 = vadd.f32 %v1399, %v1555
        %v1561 = vld [vmem:[%s959] sm:$0x1]
        %v1562 = vld [vmem:[%s962] sm:$0x1]
        %v1563 = vsel %vm1026, %v1560, 0.0
        %1564 = vadd.xlane.f32.xlu0 %v1563
        %v1565 = vpop.xlane.xlu0 %1564
        %v1566 = vmul.f32 %v1565, %v1375
        %v1567 = vsub.f32 %v1560, %v1566
        %v1568 = vmul.f32 %v1567, %v1567
        %v1569 = vsel %vm1026, %v1568, 0.0
        %1570 = vadd.xlane.f32.xlu0 %v1569
        %v1571 = vpop.xlane.xlu0 %1570
        %v1572 = vmul.f32 %v1571, %v1375
        %v1573 = vadd.f32 %v1572, 1e-12
        %v1574 = vrsqrt.pop %v1573
        %v1575 = vmul.f32 %v1567, %v1574
        %v1577 = vlaneseq
        %v1578 = vshrl.u32 %v1577, 7
        %v1579 = vsub.s32 0, %v1578
        %v1580 = vrot.slane %v1561, %v1579
        %v1582 = vmul.f32 %v1575, %v1580
        %v1584 = vlaneseq
        %v1585 = vshrl.u32 %v1584, 7
        %v1586 = vsub.s32 0, %v1585
        %v1587 = vrot.slane %v1562, %v1586
        %v1589 = vadd.f32 %v1582, %v1587
        %1590 = vst.msk [vmem:[#allocation2] sm:$0xff] %vm1026, %v1589
        %p1591 = scmp.eq.s32.totalorder %s43, 1
        // Predicated region
        $region133: #{tpu_custom_call.1} parent=99 // pred_check
          %p1592 = pneg %p1591
        $region134: #{tpu_custom_call.1} parent=99 // pred_check_branch
          %1594 = sbr.rel (%p1592) target = $region136
        $region135: #{tpu_custom_call.1} parent=99 // pred_region
          %v1595 = vpack.c.bf16 %v1589, %v1589
          %v1596 = vld [vmem:[%s16] sm:$0xf]
          %v1597 = vld [vmem:[%s16 + $0x4] sm:$0xf]
          %v1598 = vld [vmem:[%s16 + $0x8] sm:$0xf]
          %v1599 = vld [vmem:[%s16 + $0xc] sm:$0xf]
          %v1600 = vld [vmem:[%s17] sm:$0x1]
          %v1605 = vunpack.c.l.b16 %v1596
          %v1606 = vunpack.c.l.b16 %v1597
          %v1607 = vunpack.c.l.b16 %v1598
          %v1608 = vunpack.c.l.b16 %v1599
          %v1609 = vpack.c.b16 %v1606, %v1605
          %v1610 = vpack.c.b16 %v1608, %v1607
          %v1614 = vsel %vm1026, %v1595, 0
          %1616 = vmatprep.subr.bf16.mxu0 0
          %1617 = vmatpush1.bf16.msra.mxu0 %v1609
          %1618 = vmatprep.subr.bf16.mxu0 0
          %1619 = vmatpush1.bf16.msra.mxu0 %v1610
          %1620 = vmatprep.subr.bf16.mxu0 0
          %1621 = vmatpush1.bf16.msra.mxu0 0
          %1622 = vmatprep.subr.bf16.mxu0 0
          %1623 = vmatpush1.bf16.msra.mxu0 0
          %1624 = vmatprep.subr.bf16.mxu0 0
          %1625 = vmatpush1.bf16.msra.mxu0 0
          %1626 = vmatprep.subr.bf16.mxu0 0
          %1627 = vmatpush1.bf16.msra.mxu0 0
          %1628 = vmatprep.subr.bf16.mxu0 0
          %1629 = vmatpush1.bf16.msra.mxu0 0
          %1630 = vmatprep.subr.bf16.mxu0 0
          %1631 = vmatpush1.bf16.msra.mxu0 0
          %1632 = vmatprep.subr.bf16.mxu0 0
          %1633 = vmatpush1.bf16.msra.mxu0 0
          %1634 = vmatprep.subr.bf16.mxu0 0
          %1635 = vmatpush1.bf16.msra.mxu0 0
          %1636 = vmatprep.subr.bf16.mxu0 0
          %1637 = vmatpush1.bf16.msra.mxu0 0
          %1638 = vmatprep.subr.bf16.mxu0 0
          %1639 = vmatpush1.bf16.msra.mxu0 0
          %1640 = vmatprep.subr.bf16.mxu0 0
          %1641 = vmatpush1.bf16.msra.mxu0 0
          %1642 = vmatprep.subr.bf16.mxu0 0
          %1643 = vmatpush1.bf16.msra.mxu0 0
          %1644 = vmatprep.subr.bf16.mxu0 0
          %1645 = vmatpush1.bf16.msra.mxu0 0
          %1646 = vmatprep.subr.bf16.mxu0 0
          %1647 = vmatpush1.bf16.msra.mxu0 0
          %1648 = vmatprep.mubr.bf16.mxu0 0
          %1649 = vmatmul.mubr.bf16.gmra.mrb[0].mxu0 %v1614
          %v1650 = vpop.f32.mrb[0].mxu0
          %v1651 = vadd.f32 %v1600, %v1650
          %v1652 = vpop.f32.mrb[0].mxu0
          %v1653 = vpop.f32.mrb[0].mxu0
          %v1654 = vpop.f32.mrb[0].mxu0
          %1655 = vdwg.mxu0
          %v1656 = vtanh.pop %v1651
          %v1657 = vpack.c.bf16 %v1656, %v1656
          %v1658 = vld [vmem:[%s18] sm:$0xf]
          %v1659 = vld [vmem:[%s18 + $0x4] sm:$0xf]
          %v1660 = vld [vmem:[%s18 + $0x8] sm:$0xf]
          %v1661 = vld [vmem:[%s18 + $0xc] sm:$0xf]
          %v1662 = vld [vmem:[%s19] sm:$0x1]
          %v1667 = vunpack.c.l.b16 %v1658
          %v1668 = vunpack.c.l.b16 %v1659
          %v1669 = vunpack.c.l.b16 %v1660
          %v1670 = vunpack.c.l.b16 %v1661
          %v1671 = vpack.c.b16 %v1668, %v1667
          %v1672 = vpack.c.b16 %v1670, %v1669
          %v1676 = vsel %vm1026, %v1657, 0
          %1678 = vmatprep.subr.bf16.mxu0 0
          %1679 = vmatpush1.bf16.msra.mxu0 %v1671
          %1680 = vmatprep.subr.bf16.mxu0 0
          %1681 = vmatpush1.bf16.msra.mxu0 %v1672
          %1682 = vmatprep.subr.bf16.mxu0 0
          %1683 = vmatpush1.bf16.msra.mxu0 0
          %1684 = vmatprep.subr.bf16.mxu0 0
          %1685 = vmatpush1.bf16.msra.mxu0 0
          %1686 = vmatprep.subr.bf16.mxu0 0
          %1687 = vmatpush1.bf16.msra.mxu0 0
          %1688 = vmatprep.subr.bf16.mxu0 0
          %1689 = vmatpush1.bf16.msra.mxu0 0
          %1690 = vmatprep.subr.bf16.mxu0 0
          %1691 = vmatpush1.bf16.msra.mxu0 0
          %1692 = vmatprep.subr.bf16.mxu0 0
          %1693 = vmatpush1.bf16.msra.mxu0 0
          %1694 = vmatprep.subr.bf16.mxu0 0
          %1695 = vmatpush1.bf16.msra.mxu0 0
          %1696 = vmatprep.subr.bf16.mxu0 0
          %1697 = vmatpush1.bf16.msra.mxu0 0
          %1698 = vmatprep.subr.bf16.mxu0 0
          %1699 = vmatpush1.bf16.msra.mxu0 0
          %1700 = vmatprep.subr.bf16.mxu0 0
          %1701 = vmatpush1.bf16.msra.mxu0 0
          %1702 = vmatprep.subr.bf16.mxu0 0
          %1703 = vmatpush1.bf16.msra.mxu0 0
          %1704 = vmatprep.subr.bf16.mxu0 0
          %1705 = vmatpush1.bf16.msra.mxu0 0
          %1706 = vmatprep.subr.bf16.mxu0 0
          %1707 = vmatpush1.bf16.msra.mxu0 0
          %1708 = vmatprep.subr.bf16.mxu0 0
          %1709 = vmatpush1.bf16.msra.mxu0 0
          %1710 = vmatprep.mubr.bf16.mxu0 0
          %1711 = vmatmul.mubr.bf16.gmra.mrb[0].mxu0 %v1676
          %v1712 = vpop.f32.mrb[0].mxu0
          %v1713 = vadd.f32 %v1662, %v1712
          %v1714 = vpop.f32.mrb[0].mxu0
          %v1715 = vpop.f32.mrb[0].mxu0
          %v1716 = vpop.f32.mrb[0].mxu0
          %1717 = vdwg.mxu0
          %vm1718 = vcmask 16384
          %1719 = vst.msk [vmem:[%s929] sm:$0x1] %vm1718, %v1713
        $region136: #{tpu_custom_call.1} parent=99 // pred_fallthru
          _
        %s1720 = sand.u32 %s548, 1
        %s1721 = scalar_lea.sflag [#allocation5], %s1720
        %s1722 = sand.u32 %s548, 1
        %s1723 = scalar_lea.vmem [#allocation13], %s1722
        // Predicated region
        $region137: #{tpu_custom_call.1} parent=99 // pred_check
          %p1724 = pneg %p558
        $region138: #{tpu_custom_call.1} parent=99 // pred_check_branch
          %1726 = sbr.rel (%p1724) target = $region140
        $region139: #{tpu_custom_call.1} parent=99 // pred_region
          %s1728 = ssub.s32 16, 16
          %1729 = vsyncadd %s1721, %s1728
          %s1730 = smul.addr %s42, 16
          %s1731 = scalar_lea.hbm %s20, %s1730
          %s1733 = sshll.u32 %s1723, 4
          %s1734 = int_to_ptr.vmem [resolvable:$true] %s1733
          %1736 = dma.vmem_to_hbm [thread:$0]  %s1734, 16, %s1731, %s1721
        $region140: #{tpu_custom_call.1} parent=99 // pred_fallthru
          _
      $region100: #{tpu_custom_call.1} parent=5 // pred_fallthru
        _
      %p1737 = scmp.le.s32.totalorder 2, %s33
      // Predicated region
      $region141: #{tpu_custom_call.1} parent=5 // pred_check
        %p1738 = pneg %p1737
      $region142: #{tpu_custom_call.1} parent=5 // pred_check_branch
        %1740 = sbr.rel (%p1738) target = $region144
      $region143: #{tpu_custom_call.1} parent=5 // pred_region
        %s1741 = ssub.s32 %s33, 2
        // Predicated region
        $region145: #{tpu_custom_call.1} parent=143 // pred_check
          %p1742 = pneg %p564
        $region146: #{tpu_custom_call.1} parent=143 // pred_check_branch
          %1744 = sbr.rel (%p1742) target = $region148
        $region147: #{tpu_custom_call.1} parent=143 // pred_region
          %s1745 = sand.u32 %s549, 1
          %s1746 = scalar_lea.sflag [#allocation5], %s1745
          %s1747 = sand.u32 %s549, 1
          %s1748 = scalar_lea.vmem [#allocation13], %s1747
          %1749 = dma.done %s1746, 16
        $region148: #{tpu_custom_call.1} parent=143 // pred_fallthru
          _
      $region144: #{tpu_custom_call.1} parent=5 // pred_fallthru
        _
    $region6: #{tpu_custom_call.1} parent=1 // loop_footer
      %s37 = sadd.s32 1, %s33
    $region7: #{tpu_custom_call.1} parent=1 // loop_footer_branch
      %32 = sbr.rel target = $region3
    $region8: #{tpu_custom_call.1} parent=1 // loop_exit
      _
    %1750 = vsyncpa [#allocation4], 1
    %s1751 = scalar_lea.sflag [#allocation4], 1
    %1752 = vsyncpa %s1751, 1
    %1753 = vsyncpa [#allocation7], 1
    %1754 = vsyncpa [#allocation5], 1
    %s1755 = scalar_lea.sflag [#allocation5], 1
    %1756 = vsyncpa %s1755, 1

</llo_original>
